<compile_context>
chip_gen: v7x
topology: tpu7x:2x2x1
jax: 0.10.0
libtpu: 0.0.40
codegen_flags: <defaults>
</compile_context>

<pallas_src>
import functools

import jax
import jax.numpy as jnp
from jax import lax
from jax.experimental import pallas as pl
from jax.experimental.pallas import tpu as pltpu


# ----------------------------------------------------------------------------
# Fused kernel: one (image n, row-band j) grid step.
# ----------------------------------------------------------------------------
def _fused_retrieval_kernel(xpad_ref, wconv_ref, bconv_ref, wfc_ref, bfc_ref,
                            out_ref, gap_ref, *, band_rows, norm_features):
    """
    xpad_ref : (1, H+2, W+2, Cin) f32   padded NHWC image (resident across j)
    wconv_ref: (9, Cin, F)        bf16  conv taps (dy*3 + dx)
    bconv_ref: (1, F)             f32   conv bias
    wfc_ref  : (F, E)             bf16  fc weight (PyTorch (E, F) transposed)
    bfc_ref  : (1, E)             f32   fc bias
    out_ref  : (1, 1, E)          f32   embedding row for image n
    gap_ref  : (1, F)             f32   scratch: running GAP channel sums
    """
    _, Hp, Wp, Cin = xpad_ref.shape
    H, W = Hp - 2, Wp - 2
    F = wconv_ref.shape[-1]
    th = band_rows

    j = pl.program_id(1)
    last_j = pl.num_programs(1) - 1

    @pl.when(j == 0)
    def _init():
        gap_ref[...] = jnp.zeros_like(gap_ref)

    row0 = pl.multiple_of(j * th, th)

    # 3x3 conv over this row band: 9 accumulating matmuls, bf16 in / f32 acc.
    acc = jnp.zeros((th * W, F), jnp.float32)
    for dy in range(3):
        # (th, W+2, Cin) f32 slab for this vertical tap (VMEM -> vregs once).
        rows = xpad_ref[0, pl.ds(row0 + dy, th), :, :]
        for dx in range(3):
            tap = rows[:, dx:dx + W, :].reshape(th * W, Cin)
            acc = acc + jnp.dot(tap.astype(jnp.bfloat16),
                                wconv_ref[dy * 3 + dx],
                                preferred_element_type=jnp.float32)

    # bias (single hoisted broadcast) + ReLU, then partial GAP channel sums.
    feat = jnp.maximum(acc + bconv_ref[...], 0.0)              # (th*W, F) f32
    gap_ref[...] += jnp.sum(feat, axis=0, keepdims=True)       # (1, F)

    @pl.when(j == last_j)
    def _finalize():
        # global average pool + flatten
        pooled = gap_ref[...] * (1.0 / float(H * W))           # (1, F) f32

        if norm_features:
            # nn.LayerNorm(out_features, elementwise_affine=False), eps=1e-5
            mu = jnp.mean(pooled, axis=-1, keepdims=True)
            var = jnp.mean((pooled - mu) ** 2, axis=-1, keepdims=True)
            pooled = (pooled - mu) * lax.rsqrt(var + 1e-5)
        # else: nn.Identity()

        # self.fc : Linear(out_features, embed_dim)
        z = jnp.dot(pooled.astype(jnp.bfloat16), wfc_ref[...],
                    preferred_element_type=jnp.float32) + bfc_ref[...]

        # F.normalize(p=2, dim=-1): x / max(||x||, 1e-12) == x * rsqrt(max(s, 1e-24))
        sumsq = jnp.sum(z * z, axis=-1, keepdims=True)
        z = z * lax.rsqrt(jnp.maximum(sumsq, 1e-24))
        out_ref[...] = z.reshape(out_ref.shape).astype(out_ref.dtype)


# ----------------------------------------------------------------------------
# Wrapper: layout glue + pallas_call.
# ----------------------------------------------------------------------------
def retrieval_net_forward(x_nchw, params, *, norm_features=False, band_rows=8):
    """RetrievalNet.forward (defaults: normalize=True, without_fc=False).

    x_nchw: (N, Cin, H, W) f32 (PyTorch layout). Returns (N, embed_dim) f32.
    """
    # NCHW -> NHWC + pad=1: read/written once; tiny next to the eliminated
    # (N*H*W, F) feature-map round trip.
    x_nhwc = jnp.transpose(x_nchw, (0, 2, 3, 1)).astype(jnp.float32)
    N, H, W, Cin = x_nhwc.shape
    xpad = jnp.pad(x_nhwc, ((0, 0), (1, 1), (1, 1), (0, 0)))

    w_conv = params["w_conv"]                         # (3, 3, Cin, F)
    F_out = w_conv.shape[-1]
    E = params["w_fc_t"].shape[-1]

    # MXU operands in bf16 (autocast policy); accumulation & pointwise math f32.
    w_taps = w_conv.reshape(9, Cin, F_out).astype(jnp.bfloat16)
    b_conv = params["b_conv"].reshape(1, F_out).astype(jnp.float32)
    w_fc = params["w_fc_t"].astype(jnp.bfloat16)      # (F, E)
    b_fc = params["b_fc"].reshape(1, E).astype(jnp.float32)

    th = band_rows if (H % band_rows == 0) else H
    n_bands = H // th

    out = pl.pallas_call(
        functools.partial(_fused_retrieval_kernel,
                          band_rows=th, norm_features=norm_features),
        out_shape=jax.ShapeDtypeStruct((N, 1, E), jnp.float32),
        grid_spec=pltpu.PrefetchScalarGridSpec(
            num_scalar_prefetch=0,
            grid=(N, n_bands),                        # (image, row-band)
            in_specs=[
                # Padded image: block index depends only on n, so it is DMA'd
                # from HBM once per image and stays resident across its bands.
                pl.BlockSpec((1, H + 2, W + 2, Cin), lambda n, j: (n, 0, 0, 0)),
                pl.BlockSpec((9, Cin, F_out), lambda n, j: (0, 0, 0)),
                pl.BlockSpec((1, F_out), lambda n, j: (0, 0)),
                pl.BlockSpec((F_out, E), lambda n, j: (0, 0)),
                pl.BlockSpec((1, E), lambda n, j: (0, 0)),
            ],
            out_specs=pl.BlockSpec((1, 1, E), lambda n, j: (n, 0, 0)),
            scratch_shapes=[pltpu.VMEM((1, F_out), jnp.float32)],   # GAP sums
        ),
        compiler_params=pltpu.CompilerParams(
            dimension_semantics=("parallel", "arbitrary")),
    )(xpad, w_taps, b_conv, w_fc, b_fc)

    return out.reshape(N, E)


def init_params(key, *, c_in=4, out_features=32, embed_dim=32):
    k1, k2, k3, k4 = jax.random.split(key, 4)
    w_conv = jax.random.normal(k1, (3, 3, c_in, out_features), jnp.float32) * 0.1
    b_conv = jax.random.normal(k2, (out_features,), jnp.float32) * 0.01
    # PyTorch Linear weight is (E, F); we store its transpose (F, E).
    w_fc = jax.random.normal(k3, (embed_dim, out_features), jnp.float32) * 0.1
    b_fc = jax.random.normal(k4, (embed_dim,), jnp.float32) * 0.01
    return {"w_conv": w_conv, "b_conv": b_conv,
            "w_fc_t": w_fc.T, "b_fc": b_fc}


# ----------------------------------------------------------------------------
# Pure-JAX reference (f32) for numerical sanity.
# ----------------------------------------------------------------------------
def _reference_forward(x_nchw, params, *, norm_features=False):
    x = jnp.transpose(x_nchw, (0, 2, 3, 1)).astype(jnp.float32)
    N, H, W, _ = x.shape
    xp = jnp.pad(x, ((0, 0), (1, 1), (1, 1), (0, 0)))
    w = params["w_conv"]
    y = 0.0
    for dy in range(3):
        for dx in range(3):
            y = y + jnp.einsum("nhwc,cf->nhwf",
                               xp[:, dy:dy + H, dx:dx + W, :], w[dy, dx])
    y = jnp.maximum(y + params["b_conv"], 0.0)
    pooled = jnp.mean(y, axis=(1, 2))
    if norm_features:
        mu = jnp.mean(pooled, -1, keepdims=True)
        var = jnp.mean((pooled - mu) ** 2, -1, keepdims=True)
        pooled = (pooled - mu) / jnp.sqrt(var + 1e-5)
    z = pooled @ params["w_fc_t"] + params["b_fc"]
    nrm = jnp.linalg.norm(z, axis=-1, keepdims=True)
    return z / jnp.maximum(nrm, 1e-12)


if __name__ == "__main__":
    key = jax.random.PRNGKey(0)
    kx, kp = jax.random.split(key)

    N, C, H, W = 2, 4, 16, 16
    out_features, embed_dim = 32, 32

    x = jax.random.normal(kx, (N, C, H, W), jnp.float32)
    params = init_params(kp, c_in=C, out_features=out_features,
                         embed_dim=embed_dim)

    out = retrieval_net_forward(x, params, norm_features=False)
    out = jax.block_until_ready(out)

    assert out.shape == (N, embed_dim), out.shape
    # sanity: L2-normalized rows
    norms = jnp.linalg.norm(out, axis=-1)
    assert bool(jnp.all(jnp.abs(norms - 1.0) < 1e-4)), norms

    # numerical faithfulness vs. f32 reference (kernel uses bf16 MXU operands)
    ref = _reference_forward(x, params, norm_features=False)
    max_err = float(jnp.max(jnp.abs(out - ref)))
    assert max_err < 5e-2, max_err

    print("KERNEL_OK")
</pallas_src>

<mosaic_0001>
module attributes {stable_mosaic.version = 11 : i64} {
  func.func @_fused_retrieval_kernel(%arg0: i32, %arg1: i32, %arg2: memref<1x18x18x4xf32, #tpu.memory_space<vmem>>, %arg3: memref<9x4x32xbf16, #tpu.memory_space<vmem>>, %arg4: memref<1x32xf32, #tpu.memory_space<vmem>>, %arg5: memref<32x32xbf16, #tpu.memory_space<vmem>>, %arg6: memref<1x32xf32, #tpu.memory_space<vmem>>, %arg7: memref<1x1x32xf32, #tpu.memory_space<vmem>>, %arg8: memref<1x32xf32, #tpu.memory_space<vmem>>) attributes {dimension_semantics = [#tpu.dimension_semantics<parallel>, #tpu.dimension_semantics<arbitrary>], iteration_bounds = array<i64: 2, 2>, scalar_prefetch = 0 : i64, scratch_operands = 1 : i64, tpu.core_type = #tpu.core_type<tc>, window_params = [{transform_indices = @transform_0, window_bounds = array<i64: 1, 18, 18, 4>}, {pipeline_mode = #tpu.pipeline_mode<synchronous>, transform_indices = @transform_1, window_bounds = array<i64: 9, 4, 32>}, {pipeline_mode = #tpu.pipeline_mode<synchronous>, transform_indices = @transform_2, window_bounds = array<i64: 1, 32>}, {pipeline_mode = #tpu.pipeline_mode<synchronous>, transform_indices = @transform_3, window_bounds = array<i64: 32, 32>}, {pipeline_mode = #tpu.pipeline_mode<synchronous>, transform_indices = @transform_4, window_bounds = array<i64: 1, 32>}, {transform_indices = @transform_5, window_bounds = array<i64: 1, 1, 32>}]} {
    %c0_i32 = arith.constant 0 : i32
    %0 = arith.cmpi eq, %arg1, %c0_i32 : i32
    %1 = arith.extui %0 : i1 to i32
    %c0_i32_0 = arith.constant 0 : i32
    %2 = arith.cmpi ne, %1, %c0_i32_0 : i32
    scf.if %2 {
      %cst_48 = arith.constant 0.000000e+00 : f32
      %94 = vector.broadcast %cst_48 : f32 to vector<1x32xf32>
      %c0_49 = arith.constant 0 : index
      %c0_50 = arith.constant 0 : index
      %95 = vector.load %arg8[%c0_49, %c0_50] : memref<1x32xf32, #tpu.memory_space<vmem>>, vector<1x32xf32>
      tpu.vector_store %arg8[%c0_49, %c0_50], %94 {strides = array<i32>} : memref<1x32xf32, #tpu.memory_space<vmem>>, vector<1x32xf32>,
    } else {
    }
    %c8_i32 = arith.constant 8 : i32
    %3 = arith.muli %arg1, %c8_i32 : i32
    %4 = tpu.assume_multiple %3, 8 : i32
    %cst = arith.constant 0.000000e+00 : f32
    %5 = vector.broadcast %cst : f32 to vector<128x32xf32>
    %c0_i32_1 = arith.constant 0 : i32
    %6 = arith.addi %4, %c0_i32_1 : i32
    %c0 = arith.constant 0 : index
    %7 = arith.index_cast %6 : i32 to index
    %c0_2 = arith.constant 0 : index
    %c0_3 = arith.constant 0 : index
    %8 = vector.load %arg2[%c0, %7, %c0_2, %c0_3] : memref<1x18x18x4xf32, #tpu.memory_space<vmem>>, vector<1x8x18x4xf32>
    %9 = vector.shape_cast %8 : vector<1x8x18x4xf32> to vector<8x18x4xf32>
    %10 = vector.extract_strided_slice %9 {offsets = [0, 0, 0], sizes = [8, 16, 4], strides = [1, 1, 1]} : vector<8x18x4xf32> to vector<8x16x4xf32>
    %11 = vector.shape_cast %10 : vector<8x16x4xf32> to vector<128x4xf32>
    %12 = arith.truncf %11 : vector<128x4xf32> to vector<128x4xbf16>
    %c0_4 = arith.constant 0 : index
    %c0_5 = arith.constant 0 : index
    %c0_6 = arith.constant 0 : index
    %13 = vector.load %arg3[%c0_4, %c0_5, %c0_6] : memref<9x4x32xbf16, #tpu.memory_space<vmem>>, vector<1x4x32xbf16>
    %14 = vector.shape_cast %13 : vector<1x4x32xbf16> to vector<4x32xbf16>
    %cst_7 = arith.constant dense<0.000000e+00> : vector<128x32xf32>
    %15 = tpu.matmul %12, %14, %cst_7 {dimension_numbers = #tpu.dot_dimension_numbers<[1], [0], [0], [1], [0, 0, 1, 1], [], []>} : vector<128x4xbf16>, vector<4x32xbf16>, vector<128x32xf32> -> vector<128x32xf32>
    %16 = arith.addf %5, %15 : vector<128x32xf32>
    %17 = vector.extract_strided_slice %9 {offsets = [0, 1, 0], sizes = [8, 16, 4], strides = [1, 1, 1]} : vector<8x18x4xf32> to vector<8x16x4xf32>
    %18 = vector.shape_cast %17 : vector<8x16x4xf32> to vector<128x4xf32>
    %19 = arith.truncf %18 : vector<128x4xf32> to vector<128x4xbf16>
    %c1 = arith.constant 1 : index
    %c0_8 = arith.constant 0 : index
    %c0_9 = arith.constant 0 : index
    %20 = vector.load %arg3[%c1, %c0_8, %c0_9] : memref<9x4x32xbf16, #tpu.memory_space<vmem>>, vector<1x4x32xbf16>
    %21 = vector.shape_cast %20 : vector<1x4x32xbf16> to vector<4x32xbf16>
    %cst_10 = arith.constant dense<0.000000e+00> : vector<128x32xf32>
    %22 = tpu.matmul %19, %21, %cst_10 {dimension_numbers = #tpu.dot_dimension_numbers<[1], [0], [0], [1], [0, 0, 1, 1], [], []>} : vector<128x4xbf16>, vector<4x32xbf16>, vector<128x32xf32> -> vector<128x32xf32>
    %23 = arith.addf %16, %22 : vector<128x32xf32>
    %24 = vector.extract_strided_slice %9 {offsets = [0, 2, 0], sizes = [8, 16, 4], strides = [1, 1, 1]} : vector<8x18x4xf32> to vector<8x16x4xf32>
    %25 = vector.shape_cast %24 : vector<8x16x4xf32> to vector<128x4xf32>
    %26 = arith.truncf %25 : vector<128x4xf32> to vector<128x4xbf16>
    %c2 = arith.constant 2 : index
    %c0_11 = arith.constant 0 : index
    %c0_12 = arith.constant 0 : index
    %27 = vector.load %arg3[%c2, %c0_11, %c0_12] : memref<9x4x32xbf16, #tpu.memory_space<vmem>>, vector<1x4x32xbf16>
    %28 = vector.shape_cast %27 : vector<1x4x32xbf16> to vector<4x32xbf16>
    %cst_13 = arith.constant dense<0.000000e+00> : vector<128x32xf32>
    %29 = tpu.matmul %26, %28, %cst_13 {dimension_numbers = #tpu.dot_dimension_numbers<[1], [0], [0], [1], [0, 0, 1, 1], [], []>} : vector<128x4xbf16>, vector<4x32xbf16>, vector<128x32xf32> -> vector<128x32xf32>
    %30 = arith.addf %23, %29 : vector<128x32xf32>
    %c1_i32 = arith.constant 1 : i32
    %31 = arith.addi %4, %c1_i32 : i32
    %c0_14 = arith.constant 0 : index
    %32 = arith.index_cast %31 : i32 to index
    %c0_15 = arith.constant 0 : index
    %c0_16 = arith.constant 0 : index
    %33 = vector.load %arg2[%c0_14, %32, %c0_15, %c0_16] : memref<1x18x18x4xf32, #tpu.memory_space<vmem>>, vector<1x8x18x4xf32>
    %34 = vector.shape_cast %33 : vector<1x8x18x4xf32> to vector<8x18x4xf32>
    %35 = vector.extract_strided_slice %34 {offsets = [0, 0, 0], sizes = [8, 16, 4], strides = [1, 1, 1]} : vector<8x18x4xf32> to vector<8x16x4xf32>
    %36 = vector.shape_cast %35 : vector<8x16x4xf32> to vector<128x4xf32>
    %37 = arith.truncf %36 : vector<128x4xf32> to vector<128x4xbf16>
    %c3 = arith.constant 3 : index
    %c0_17 = arith.constant 0 : index
    %c0_18 = arith.constant 0 : index
    %38 = vector.load %arg3[%c3, %c0_17, %c0_18] : memref<9x4x32xbf16, #tpu.memory_space<vmem>>, vector<1x4x32xbf16>
    %39 = vector.shape_cast %38 : vector<1x4x32xbf16> to vector<4x32xbf16>
    %cst_19 = arith.constant dense<0.000000e+00> : vector<128x32xf32>
    %40 = tpu.matmul %37, %39, %cst_19 {dimension_numbers = #tpu.dot_dimension_numbers<[1], [0], [0], [1], [0, 0, 1, 1], [], []>} : vector<128x4xbf16>, vector<4x32xbf16>, vector<128x32xf32> -> vector<128x32xf32>
    %41 = arith.addf %30, %40 : vector<128x32xf32>
    %42 = vector.extract_strided_slice %34 {offsets = [0, 1, 0], sizes = [8, 16, 4], strides = [1, 1, 1]} : vector<8x18x4xf32> to vector<8x16x4xf32>
    %43 = vector.shape_cast %42 : vector<8x16x4xf32> to vector<128x4xf32>
    %44 = arith.truncf %43 : vector<128x4xf32> to vector<128x4xbf16>
    %c4 = arith.constant 4 : index
    %c0_20 = arith.constant 0 : index
    %c0_21 = arith.constant 0 : index
    %45 = vector.load %arg3[%c4, %c0_20, %c0_21] : memref<9x4x32xbf16, #tpu.memory_space<vmem>>, vector<1x4x32xbf16>
    %46 = vector.shape_cast %45 : vector<1x4x32xbf16> to vector<4x32xbf16>
    %cst_22 = arith.constant dense<0.000000e+00> : vector<128x32xf32>
    %47 = tpu.matmul %44, %46, %cst_22 {dimension_numbers = #tpu.dot_dimension_numbers<[1], [0], [0], [1], [0, 0, 1, 1], [], []>} : vector<128x4xbf16>, vector<4x32xbf16>, vector<128x32xf32> -> vector<128x32xf32>
    %48 = arith.addf %41, %47 : vector<128x32xf32>
    %49 = vector.extract_strided_slice %34 {offsets = [0, 2, 0], sizes = [8, 16, 4], strides = [1, 1, 1]} : vector<8x18x4xf32> to vector<8x16x4xf32>
    %50 = vector.shape_cast %49 : vector<8x16x4xf32> to vector<128x4xf32>
    %51 = arith.truncf %50 : vector<128x4xf32> to vector<128x4xbf16>
    %c5 = arith.constant 5 : index
    %c0_23 = arith.constant 0 : index
    %c0_24 = arith.constant 0 : index
    %52 = vector.load %arg3[%c5, %c0_23, %c0_24] : memref<9x4x32xbf16, #tpu.memory_space<vmem>>, vector<1x4x32xbf16>
    %53 = vector.shape_cast %52 : vector<1x4x32xbf16> to vector<4x32xbf16>
    %cst_25 = arith.constant dense<0.000000e+00> : vector<128x32xf32>
    %54 = tpu.matmul %51, %53, %cst_25 {dimension_numbers = #tpu.dot_dimension_numbers<[1], [0], [0], [1], [0, 0, 1, 1], [], []>} : vector<128x4xbf16>, vector<4x32xbf16>, vector<128x32xf32> -> vector<128x32xf32>
    %55 = arith.addf %48, %54 : vector<128x32xf32>
    %c2_i32 = arith.constant 2 : i32
    %56 = arith.addi %4, %c2_i32 : i32
    %c0_26 = arith.constant 0 : index
    %57 = arith.index_cast %56 : i32 to index
    %c0_27 = arith.constant 0 : index
    %c0_28 = arith.constant 0 : index
    %58 = vector.load %arg2[%c0_26, %57, %c0_27, %c0_28] : memref<1x18x18x4xf32, #tpu.memory_space<vmem>>, vector<1x8x18x4xf32>
    %59 = vector.shape_cast %58 : vector<1x8x18x4xf32> to vector<8x18x4xf32>
    %60 = vector.extract_strided_slice %59 {offsets = [0, 0, 0], sizes = [8, 16, 4], strides = [1, 1, 1]} : vector<8x18x4xf32> to vector<8x16x4xf32>
    %61 = vector.shape_cast %60 : vector<8x16x4xf32> to vector<128x4xf32>
    %62 = arith.truncf %61 : vector<128x4xf32> to vector<128x4xbf16>
    %c6 = arith.constant 6 : index
    %c0_29 = arith.constant 0 : index
    %c0_30 = arith.constant 0 : index
    %63 = vector.load %arg3[%c6, %c0_29, %c0_30] : memref<9x4x32xbf16, #tpu.memory_space<vmem>>, vector<1x4x32xbf16>
    %64 = vector.shape_cast %63 : vector<1x4x32xbf16> to vector<4x32xbf16>
    %cst_31 = arith.constant dense<0.000000e+00> : vector<128x32xf32>
    %65 = tpu.matmul %62, %64, %cst_31 {dimension_numbers = #tpu.dot_dimension_numbers<[1], [0], [0], [1], [0, 0, 1, 1], [], []>} : vector<128x4xbf16>, vector<4x32xbf16>, vector<128x32xf32> -> vector<128x32xf32>
    %66 = arith.addf %55, %65 : vector<128x32xf32>
    %67 = vector.extract_strided_slice %59 {offsets = [0, 1, 0], sizes = [8, 16, 4], strides = [1, 1, 1]} : vector<8x18x4xf32> to vector<8x16x4xf32>
    %68 = vector.shape_cast %67 : vector<8x16x4xf32> to vector<128x4xf32>
    %69 = arith.truncf %68 : vector<128x4xf32> to vector<128x4xbf16>
    %c7 = arith.constant 7 : index
    %c0_32 = arith.constant 0 : index
    %c0_33 = arith.constant 0 : index
    %70 = vector.load %arg3[%c7, %c0_32, %c0_33] : memref<9x4x32xbf16, #tpu.memory_space<vmem>>, vector<1x4x32xbf16>
    %71 = vector.shape_cast %70 : vector<1x4x32xbf16> to vector<4x32xbf16>
    %cst_34 = arith.constant dense<0.000000e+00> : vector<128x32xf32>
    %72 = tpu.matmul %69, %71, %cst_34 {dimension_numbers = #tpu.dot_dimension_numbers<[1], [0], [0], [1], [0, 0, 1, 1], [], []>} : vector<128x4xbf16>, vector<4x32xbf16>, vector<128x32xf32> -> vector<128x32xf32>
    %73 = arith.addf %66, %72 : vector<128x32xf32>
    %74 = vector.extract_strided_slice %59 {offsets = [0, 2, 0], sizes = [8, 16, 4], strides = [1, 1, 1]} : vector<8x18x4xf32> to vector<8x16x4xf32>
    %75 = vector.shape_cast %74 : vector<8x16x4xf32> to vector<128x4xf32>
    %76 = arith.truncf %75 : vector<128x4xf32> to vector<128x4xbf16>
    %c8 = arith.constant 8 : index
    %c0_35 = arith.constant 0 : index
    %c0_36 = arith.constant 0 : index
    %77 = vector.load %arg3[%c8, %c0_35, %c0_36] : memref<9x4x32xbf16, #tpu.memory_space<vmem>>, vector<1x4x32xbf16>
    %78 = vector.shape_cast %77 : vector<1x4x32xbf16> to vector<4x32xbf16>
    %cst_37 = arith.constant dense<0.000000e+00> : vector<128x32xf32>
    %79 = tpu.matmul %76, %78, %cst_37 {dimension_numbers = #tpu.dot_dimension_numbers<[1], [0], [0], [1], [0, 0, 1, 1], [], []>} : vector<128x4xbf16>, vector<4x32xbf16>, vector<128x32xf32> -> vector<128x32xf32>
    %80 = arith.addf %73, %79 : vector<128x32xf32>
    %c0_38 = arith.constant 0 : index
    %c0_39 = arith.constant 0 : index
    %81 = vector.load %arg4[%c0_38, %c0_39] : memref<1x32xf32, #tpu.memory_space<vmem>>, vector<1x32xf32>
    %82 = vector.broadcast %81 : vector<1x32xf32> to vector<128x32xf32>
    %83 = arith.addf %80, %82 : vector<128x32xf32>
    %cst_40 = arith.constant 0.000000e+00 : f32
    %84 = vector.broadcast %cst_40 : f32 to vector<128x32xf32>
    %85 = arith.maximumf %83, %84 : vector<128x32xf32>
    %c0_41 = arith.constant 0 : index
    %c0_42 = arith.constant 0 : index
    %86 = vector.load %arg8[%c0_41, %c0_42] : memref<1x32xf32, #tpu.memory_space<vmem>>, vector<1x32xf32>
    %cst_43 = arith.constant dense<0.000000e+00> : vector<32xf32>
    %87 = vector.multi_reduction <add>, %85, %cst_43 [0] : vector<128x32xf32> to vector<32xf32>
    %88 = vector.shape_cast %87 : vector<32xf32> to vector<1x32xf32>
    %89 = arith.addf %86, %88 : vector<1x32xf32>
    %c0_44 = arith.constant 0 : index
    %c0_45 = arith.constant 0 : index
    %90 = vector.load %arg8[%c0_44, %c0_45] : memref<1x32xf32, #tpu.memory_space<vmem>>, vector<1x32xf32>
    tpu.vector_store %arg8[%c0_44, %c0_45], %89 {strides = array<i32>} : memref<1x32xf32, #tpu.memory_space<vmem>>, vector<1x32xf32>,
    %c1_i32_46 = arith.constant 1 : i32
    %91 = arith.cmpi eq, %arg1, %c1_i32_46 : i32
    %92 = arith.extui %91 : i1 to i32
    %c0_i32_47 = arith.constant 0 : i32
    %93 = arith.cmpi ne, %92, %c0_i32_47 : i32
    scf.if %93 {
      %c0_48 = arith.constant 0 : index
      %c0_49 = arith.constant 0 : index
      %94 = vector.load %arg8[%c0_48, %c0_49] : memref<1x32xf32, #tpu.memory_space<vmem>>, vector<1x32xf32>
      %cst_50 = arith.constant 3.906250e-03 : f32
      %95 = vector.broadcast %cst_50 : f32 to vector<1x32xf32>
      %96 = arith.mulf %94, %95 : vector<1x32xf32>
      %97 = arith.truncf %96 : vector<1x32xf32> to vector<1x32xbf16>
      %c0_51 = arith.constant 0 : index
      %c0_52 = arith.constant 0 : index
      %98 = vector.load %arg5[%c0_51, %c0_52] : memref<32x32xbf16, #tpu.memory_space<vmem>>, vector<32x32xbf16>
      %cst_53 = arith.constant dense<0.000000e+00> : vector<1x32xf32>
      %99 = tpu.matmul %97, %98, %cst_53 {dimension_numbers = #tpu.dot_dimension_numbers<[1], [0], [0], [1], [0, 0, 1, 1], [], []>} : vector<1x32xbf16>, vector<32x32xbf16>, vector<1x32xf32> -> vector<1x32xf32>
      %c0_54 = arith.constant 0 : index
      %c0_55 = arith.constant 0 : index
      %100 = vector.load %arg6[%c0_54, %c0_55] : memref<1x32xf32, #tpu.memory_space<vmem>>, vector<1x32xf32>
      %101 = arith.addf %99, %100 : vector<1x32xf32>
      %102 = arith.mulf %101, %101 : vector<1x32xf32>
      %cst_56 = arith.constant dense<0.000000e+00> : vector<1xf32>
      %103 = vector.multi_reduction <add>, %102, %cst_56 [1] : vector<1x32xf32> to vector<1xf32>
      %104 = vector.shape_cast %103 : vector<1xf32> to vector<1x1xf32>
      %cst_57 = arith.constant 1.000000e-24 : f32
      %105 = vector.broadcast %cst_57 : f32 to vector<1x1xf32>
      %106 = arith.maximumf %104, %105 : vector<1x1xf32>
      %107 = math.rsqrt %106 : vector<1x1xf32>
      %108 = vector.broadcast %107 : vector<1x1xf32> to vector<1x32xf32>
      %109 = arith.mulf %101, %108 : vector<1x32xf32>
      %110 = vector.shape_cast %109 : vector<1x32xf32> to vector<1x1x32xf32>
      %c0_58 = arith.constant 0 : index
      %c0_59 = arith.constant 0 : index
      %c0_60 = arith.constant 0 : index
      %111 = vector.load %arg7[%c0_58, %c0_59, %c0_60] : memref<1x1x32xf32, #tpu.memory_space<vmem>>, vector<1x1x32xf32>
      tpu.vector_store %arg7[%c0_58, %c0_59, %c0_60], %110 {strides = array<i32>} : memref<1x1x32xf32, #tpu.memory_space<vmem>>, vector<1x1x32xf32>,
    } else {
    }
    return
  }
  func.func @transform_0(%arg0: i32, %arg1: i32) -> (i32, i32, i32, i32) {
    %c0_i32 = arith.constant 0 : i32
    %c0_i32_0 = arith.constant 0 : i32
    %c0_i32_1 = arith.constant 0 : i32
    %c0_i32_2 = arith.constant 0 : i32
    return %arg0, %c0_i32, %c0_i32_0, %c0_i32_1 : i32, i32, i32, i32
  }
  func.func @transform_1(%arg0: i32, %arg1: i32) -> (i32, i32, i32) {
    %c0_i32 = arith.constant 0 : i32
    %c0_i32_0 = arith.constant 0 : i32
    %c0_i32_1 = arith.constant 0 : i32
    %c0_i32_2 = arith.constant 0 : i32
    return %c0_i32, %c0_i32_0, %c0_i32_1 : i32, i32, i32
  }
  func.func @transform_2(%arg0: i32, %arg1: i32) -> (i32, i32) {
    %c0_i32 = arith.constant 0 : i32
    %c0_i32_0 = arith.constant 0 : i32
    %c0_i32_1 = arith.constant 0 : i32
    return %c0_i32, %c0_i32_0 : i32, i32
  }
  func.func @transform_3(%arg0: i32, %arg1: i32) -> (i32, i32) {
    %c0_i32 = arith.constant 0 : i32
    %c0_i32_0 = arith.constant 0 : i32
    %c0_i32_1 = arith.constant 0 : i32
    return %c0_i32, %c0_i32_0 : i32, i32
  }
  func.func @transform_4(%arg0: i32, %arg1: i32) -> (i32, i32) {
    %c0_i32 = arith.constant 0 : i32
    %c0_i32_0 = arith.constant 0 : i32
    %c0_i32_1 = arith.constant 0 : i32
    return %c0_i32, %c0_i32_0 : i32, i32
  }
  func.func @transform_5(%arg0: i32, %arg1: i32) -> (i32, i32, i32) {
    %c0_i32 = arith.constant 0 : i32
    %c0_i32_0 = arith.constant 0 : i32
    %c0_i32_1 = arith.constant 0 : i32
    return %arg0, %c0_i32, %c0_i32_0 : i32, i32, i32
  }
}

</mosaic_0001>

<llo_original>
// kernel: tpu_custom_call.1
$region0: #{tpu_custom_call.1}
  #allocation0 [shape = 'u32[]', space=smem, size = 0x4, offset = 0x4, fixed_abs, tag = 'smem constant byte address 0x4 - core index']
  #allocation1 [shape = 'u32[144,128]{1,0:T(1,128)}', space=vmem, size = 0x12000, scoped, tag = 'internal scratch']
  #allocation2 [shape = 'f32[1,32]{1,0:T(1,128)}', space=vmem, size = 0x200, scoped, tag = 'scratch operand']
  %s0 = inlined_call_operand.vmem [shape: f32[2,18,18,4], index: 0, kind: input, shape index: {}]
  %s1 = inlined_call_operand.vmem [shape: bf16[9,4,32], index: 1, kind: input, shape index: {}]
  %s2 = inlined_call_operand.vmem [shape: f32[1,32], index: 2, kind: input, shape index: {}]
  %s3 = inlined_call_operand.vmem [shape: bf16[32,32], index: 3, kind: input, shape index: {}]
  %s4 = inlined_call_operand.vmem [shape: f32[1,32], index: 4, kind: input, shape index: {}]
  %s5 = inlined_call_operand.hbm [shape: f32[2,1,32], index: 5, kind: output, shape index: {}]
  %s6 = sld [smem:[#allocation0]]
  $region61: #{tpu_custom_call.1} parent=0
    _
  %s8 = ssub.s32 1, %s6
  %s9 = scalar_select 0, %s8, %s6
  $region1: #{tpu_custom_call.1} parent=0
    #allocation3 [shape = 'u8[1024]{0}', space=vmem, size = 0x400, scoped, tag = 'output window, operand 0']
    #allocation4 [shape = 's32[2]{0}', space=sflag, size = 0x8, scoped, tag = 'scoped memory for tpu_custom_call.1']
    %10 = vsyncpa [#allocation4], 0
    %s11 = scalar_lea.sflag [#allocation4], 1
    %12 = vsyncpa %s11, 0
    loop: start=0, step=1, limit=6
    $region2: #{tpu_custom_call.1} parent=1 // loop_pre_header
      _
    $region3: #{tpu_custom_call.1} parent=1 // loop_header
      %s14 = sphi 0, %s18
      %p15 = scmp.ge.s32.totalorder %s14, 6
      %s21 = sphi 0, %s33
      %s22 = sphi 0, %s29
      %s23 = sphi 0, %s21
      %s24 = sphi 0, %s22
      %s25 = sphi 0, %s23
      %s26 = sphi 0, %s24
      %s36 = sphi 0, %s38
      %s39 = sphi 0, %s36
      %s40 = sphi 0, %s39
      %s56 = sphi 0, %s40
      %s60 = sphi 0, %s60
      %s62 = sphi 0, %s60
      %s63 = sphi 0, %s62
      %s77 = sphi 0, %s63
      %s81 = sphi 0, %s81
      %s83 = sphi 0, %s81
      %s84 = sphi 0, %s83
      %s98 = sphi 0, %s84
      %s102 = sphi 0, %s102
      %s104 = sphi 0, %s102
      %s105 = sphi 0, %s104
      %s119 = sphi 0, %s105
      %s123 = sphi 0, %s123
      %s125 = sphi 0, %s123
      %s126 = sphi 0, %s125
      %s140 = sphi 0, %s126
      %s146 = sphi 0, %s148
      %s149 = sphi 0, %s146
      %s150 = sphi 0, %s149
      %s166 = sphi 0, %s150
    $region4: #{tpu_custom_call.1} parent=1 // loop_header_branch
      %17 = sbr.rel (%p15) target = $region8
    $region5: #{tpu_custom_call.1} parent=1 // loop_body
      %s19 = ssub.s32 %s14, 1
      %s20 = ssub.s32 %s14, 2
      %s27 = sadd.s32 1, %s22
      %p28 = scmp.ge.s32.totalorder %s27, 2
      %s29 = scalar_select %p28, 0, %s27
      %s30 = sadd.s32 1, %s21
      %s31 = scalar_select %p28, %s30, %s21
      %p32 = scmp.ge.s32.totalorder %s31, 2
      %s33 = scalar_select %p32, 0, %s31
      %s34 = ssub.s32 %s21, %s33
      %p35 = scmp.eq.s32.totalorder %s34, 0
      %s37 = sadd.s32 %s36, 1
      %s38 = scalar_select %p35, %s36, %s37
      %p41 = pneg %p35
      %p42 = scmp.eq.s32.totalorder %s14, 3
      %p43 = por %p41, %p42
      %p44 = scmp.ne.s32.totalorder %s36, %s39
      %p45 = scmp.eq.s32.totalorder %s14, 0
      %p46 = por %p44, %p45
      %p47 = scmp.ne.s32.totalorder %s36, %s39
      %p48 = scmp.eq.s32.totalorder %s19, 3
      %p49 = por %p47, %p48
      %p50 = scmp.ne.s32.totalorder %s39, %s40
      %p51 = scmp.eq.s32.totalorder %s19, 0
      %p52 = por %p50, %p51
      %p53 = scmp.ne.s32.totalorder %s39, %s40
      %p54 = scmp.eq.s32.totalorder %s20, 3
      %p55 = por %p53, %p54
      %p57 = scmp.ne.s32.totalorder %s40, %s56
      %p58 = scmp.eq.s32.totalorder %s20, 0
      %p59 = por %p57, %p58
      %s61 = sadd.s32 %s60, 1
      %p64 = scmp.eq.s32.totalorder %s14, 3
      %p65 = scmp.ne.s32.totalorder %s60, %s62
      %p66 = scmp.eq.s32.totalorder %s14, 0
      %p67 = por %p65, %p66
      %p68 = scmp.ne.s32.totalorder %s60, %s62
      %p69 = scmp.eq.s32.totalorder %s19, 3
      %p70 = por %p68, %p69
      %p71 = scmp.ne.s32.totalorder %s62, %s63
      %p72 = scmp.eq.s32.totalorder %s19, 0
      %p73 = por %p71, %p72
      %p74 = scmp.ne.s32.totalorder %s62, %s63
      %p75 = scmp.eq.s32.totalorder %s20, 3
      %p76 = por %p74, %p75
      %p78 = scmp.ne.s32.totalorder %s63, %s77
      %p79 = scmp.eq.s32.totalorder %s20, 0
      %p80 = por %p78, %p79
      %s82 = sadd.s32 %s81, 1
      %p85 = scmp.eq.s32.totalorder %s14, 3
      %p86 = scmp.ne.s32.totalorder %s81, %s83
      %p87 = scmp.eq.s32.totalorder %s14, 0
      %p88 = por %p86, %p87
      %p89 = scmp.ne.s32.totalorder %s81, %s83
      %p90 = scmp.eq.s32.totalorder %s19, 3
      %p91 = por %p89, %p90
      %p92 = scmp.ne.s32.totalorder %s83, %s84
      %p93 = scmp.eq.s32.totalorder %s19, 0
      %p94 = por %p92, %p93
      %p95 = scmp.ne.s32.totalorder %s83, %s84
      %p96 = scmp.eq.s32.totalorder %s20, 3
      %p97 = por %p95, %p96
      %p99 = scmp.ne.s32.totalorder %s84, %s98
      %p100 = scmp.eq.s32.totalorder %s20, 0
      %p101 = por %p99, %p100
      %s103 = sadd.s32 %s102, 1
      %p106 = scmp.eq.s32.totalorder %s14, 3
      %p107 = scmp.ne.s32.totalorder %s102, %s104
      %p108 = scmp.eq.s32.totalorder %s14, 0
      %p109 = por %p107, %p108
      %p110 = scmp.ne.s32.totalorder %s102, %s104
      %p111 = scmp.eq.s32.totalorder %s19, 3
      %p112 = por %p110, %p111
      %p113 = scmp.ne.s32.totalorder %s104, %s105
      %p114 = scmp.eq.s32.totalorder %s19, 0
      %p115 = por %p113, %p114
      %p116 = scmp.ne.s32.totalorder %s104, %s105
      %p117 = scmp.eq.s32.totalorder %s20, 3
      %p118 = por %p116, %p117
      %p120 = scmp.ne.s32.totalorder %s105, %s119
      %p121 = scmp.eq.s32.totalorder %s20, 0
      %p122 = por %p120, %p121
      %s124 = sadd.s32 %s123, 1
      %p127 = scmp.eq.s32.totalorder %s14, 3
      %p128 = scmp.ne.s32.totalorder %s123, %s125
      %p129 = scmp.eq.s32.totalorder %s14, 0
      %p130 = por %p128, %p129
      %p131 = scmp.ne.s32.totalorder %s123, %s125
      %p132 = scmp.eq.s32.totalorder %s19, 3
      %p133 = por %p131, %p132
      %p134 = scmp.ne.s32.totalorder %s125, %s126
      %p135 = scmp.eq.s32.totalorder %s19, 0
      %p136 = por %p134, %p135
      %p137 = scmp.ne.s32.totalorder %s125, %s126
      %p138 = scmp.eq.s32.totalorder %s20, 3
      %p139 = por %p137, %p138
      %p141 = scmp.ne.s32.totalorder %s126, %s140
      %p142 = scmp.eq.s32.totalorder %s20, 0
      %p143 = por %p141, %p142
      %s144 = ssub.s32 %s21, %s33
      %p145 = scmp.eq.s32.totalorder %s144, 0
      %s147 = sadd.s32 %s146, 1
      %s148 = scalar_select %p145, %s146, %s147
      %p151 = pneg %p145
      %p152 = scmp.eq.s32.totalorder %s14, 3
      %p153 = por %p151, %p152
      %p154 = scmp.ne.s32.totalorder %s146, %s149
      %p155 = scmp.eq.s32.totalorder %s14, 0
      %p156 = por %p154, %p155
      %p157 = scmp.ne.s32.totalorder %s146, %s149
      %p158 = scmp.eq.s32.totalorder %s19, 3
      %p159 = por %p157, %p158
      %p160 = scmp.ne.s32.totalorder %s149, %s150
      %p161 = scmp.eq.s32.totalorder %s19, 0
      %p162 = por %p160, %p161
      %p163 = scmp.ne.s32.totalorder %s149, %s150
      %p164 = scmp.eq.s32.totalorder %s20, 3
      %p165 = por %p163, %p164
      %p167 = scmp.ne.s32.totalorder %s150, %s166
      %p168 = scmp.eq.s32.totalorder %s20, 0
      %p169 = por %p167, %p168
      %p170 = scmp.le.s32.totalorder 1, %s14
      %p171 = scmp.lt.s32.totalorder %s14, 5
      %p172 = pnand %p170, %p171
      %p173 = pneg %p172
      // Predicated region
      $region9: #{tpu_custom_call.1} parent=5 // pred_check
        _
      $region10: #{tpu_custom_call.1} parent=5 // pred_check_branch
        %175 = sbr.rel (%p172) target = $region12
      $region11: #{tpu_custom_call.1} parent=5 // pred_region
        %s176 = ssub.s32 %s14, 1
        // Predicated region
        $region13: #{tpu_custom_call.1} parent=11 // pred_check
          %p177 = pneg %p73
        $region14: #{tpu_custom_call.1} parent=11 // pred_check_branch
          %179 = sbr.rel (%p177) target = $region16
        $region15: #{tpu_custom_call.1} parent=11 // pred_region
          _
        $region16: #{tpu_custom_call.1} parent=11 // pred_fallthru
          _
        // Predicated region
        $region17: #{tpu_custom_call.1} parent=11 // pred_check
          %p180 = pneg %p94
        $region18: #{tpu_custom_call.1} parent=11 // pred_check_branch
          %182 = sbr.rel (%p180) target = $region20
        $region19: #{tpu_custom_call.1} parent=11 // pred_region
          _
        $region20: #{tpu_custom_call.1} parent=11 // pred_fallthru
          _
        // Predicated region
        $region21: #{tpu_custom_call.1} parent=11 // pred_check
          %p183 = pneg %p115
        $region22: #{tpu_custom_call.1} parent=11 // pred_check_branch
          %185 = sbr.rel (%p183) target = $region24
        $region23: #{tpu_custom_call.1} parent=11 // pred_region
          _
        $region24: #{tpu_custom_call.1} parent=11 // pred_fallthru
          _
        // Predicated region
        $region25: #{tpu_custom_call.1} parent=11 // pred_check
          %p186 = pneg %p136
        $region26: #{tpu_custom_call.1} parent=11 // pred_check_branch
          %188 = sbr.rel (%p186) target = $region28
        $region27: #{tpu_custom_call.1} parent=11 // pred_region
          _
        $region28: #{tpu_custom_call.1} parent=11 // pred_fallthru
          _
      $region12: #{tpu_custom_call.1} parent=5 // pred_fallthru
        _
      %p189 = scmp.lt.s32.totalorder %s14, 4
      // Predicated region
      $region29: #{tpu_custom_call.1} parent=5 // pred_check
        %p190 = pneg %p189
      $region30: #{tpu_custom_call.1} parent=5 // pred_check_branch
        %192 = sbr.rel (%p190) target = $region32
      $region31: #{tpu_custom_call.1} parent=5 // pred_region
        // Predicated region
        $region33: #{tpu_custom_call.1} parent=31 // pred_check
          %p193 = pneg %p46
        $region34: #{tpu_custom_call.1} parent=31 // pred_check_branch
          %195 = sbr.rel (%p193) target = $region36
        $region35: #{tpu_custom_call.1} parent=31 // pred_region
          %p196 = scmp.lt.s32.totalorder %s21, 1
          %s197 = scalar_select %p196, %s21, 1
          %s198 = smul.addr %s197, 54
          %s199 = smul.addr %s198, 8
          %s200 = scalar_lea.vmem %s0, %s199
        $region36: #{tpu_custom_call.1} parent=31 // pred_fallthru
          _
      $region32: #{tpu_custom_call.1} parent=5 // pred_fallthru
        _
      %p201 = scmp.le.s32.totalorder 1, %s14
      %p202 = scmp.lt.s32.totalorder %s14, 5
      %p203 = pnand %p201, %p202
      %p204 = pneg %p203
      // Predicated region
      $region37: #{tpu_custom_call.1} parent=5 // pred_check
        _
      $region38: #{tpu_custom_call.1} parent=5 // pred_check_branch
        %206 = sbr.rel (%p203) target = $region40
      $region39: #{tpu_custom_call.1} parent=5 // pred_region
        %s207 = ssub.s32 %s14, 1
        %p208 = scmp.lt.s32.totalorder %s23, 1
        %s209 = scalar_select %p208, %s23, 1
        %s210 = smul.addr %s209, 54
        %s211 = smul.addr %s210, 8
        %s212 = scalar_lea.vmem %s0, %s211
        %p213 = pneg %p52
        %p214 = pneg %p49
        %p215 = pneg %p73
        %p216 = pneg %p70
        %p217 = pneg %p94
        %p218 = pneg %p91
        %p219 = pneg %p115
        %p220 = pneg %p112
        %p221 = pneg %p136
        %p222 = pneg %p133
        %p223 = pneg %p162
        %p224 = pneg %p159
        %s225 = sand.u32 %s149, 1
        %s226 = scalar_lea.sflag [#allocation4], %s225
        %s227 = sand.u32 %s149, 1
        %s228 = scalar_lea.vmem [#allocation3], %s227
        %p229 = scmp.lt.s32.totalorder %s23, 1
        %s230 = scalar_select %p229, %s23, 1
        %s231 = smul.addr %s230, 54
        %s232 = smul.addr %s231, 8
        %s233 = scalar_lea.vmem %s0, %s232
        %p235 = scmp.eq.s32.totalorder %s24, 0
        // Predicated region
        $region41: #{tpu_custom_call.1} parent=39 // pred_check
          %p236 = pneg %p235
        $region42: #{tpu_custom_call.1} parent=39 // pred_check_branch
          %238 = sbr.rel (%p236) target = $region44
        $region43: #{tpu_custom_call.1} parent=39 // pred_region
          %vm239 = vcmask 253952
          %240 = vst.msk [vmem:[#allocation2] sm:$0x1] %vm239, 0.0
        $region44: #{tpu_custom_call.1} parent=39 // pred_fallthru
          _
        %s241 = smul.u32 %s24, 8
        %s242 = smul.u32 %s241, 24
        %s243 = scalar_lea.vmem %s233, %s242
        %v244 = vld [vmem:[%s243] sm:$0xff]
        %v245 = vld [vmem:[%s243 + $0x8] sm:$0xff]
        %v246 = vld [vmem:[%s243 + $0x10] sm:$0x3]
        %v247 = vld [vmem:[%s243 + $0x18] sm:$0xff]
        %v248 = vld [vmem:[%s243 + $0x20] sm:$0xff]
        %v249 = vld [vmem:[%s243 + $0x28] sm:$0x3]
        %v250 = vld [vmem:[%s243 + $0x30] sm:$0xff]
        %v251 = vld [vmem:[%s243 + $0x38] sm:$0xff]
        %v252 = vld [vmem:[%s243 + $0x40] sm:$0x3]
        %v253 = vld [vmem:[%s243 + $0x48] sm:$0xff]
        %v254 = vld [vmem:[%s243 + $0x50] sm:$0xff]
        %v255 = vld [vmem:[%s243 + $0x58] sm:$0x3]
        %v256 = vld [vmem:[%s243 + $0x60] sm:$0xff]
        %v257 = vld [vmem:[%s243 + $0x68] sm:$0xff]
        %v258 = vld [vmem:[%s243 + $0x70] sm:$0x3]
        %v259 = vld [vmem:[%s243 + $0x78] sm:$0xff]
        %v260 = vld [vmem:[%s243 + $0x80] sm:$0xff]
        %v261 = vld [vmem:[%s243 + $0x88] sm:$0x3]
        %v262 = vld [vmem:[%s243 + $0x90] sm:$0xff]
        %v263 = vld [vmem:[%s243 + $0x98] sm:$0xff]
        %v264 = vld [vmem:[%s243 + $0xa0] sm:$0x3]
        %v265 = vld [vmem:[%s243 + $0xa8] sm:$0xff]
        %v266 = vld [vmem:[%s243 + $0xb0] sm:$0xff]
        %v267 = vld [vmem:[%s243 + $0xb8] sm:$0x3]
        %v268 = vpack.c.bf16 %v245, %v244
        %v269 = vpack.c.bf16 %v248, %v247
        %v270 = vpack.c.bf16 %v251, %v250
        %v271 = vpack.c.bf16 %v254, %v253
        %v272 = vpack.c.bf16 %v257, %v256
        %v273 = vpack.c.bf16 %v260, %v259
        %v274 = vpack.c.bf16 %v263, %v262
        %v275 = vpack.c.bf16 %v266, %v265
        %v276 = vld [vmem:[%s1] sm:$0x3]
        %vm301 = vcmask 1046528
        %v302 = vrot.slane %v244, 1
        %v303 = vrot.slane %v245, 1
        %v304 = vsel %vm301, %v302, %v303
        %v305 = vrot.slane %v246, 1
        %v306 = vsel %vm301, %v303, %v305
        %v307 = vrot.slane %v247, 1
        %v308 = vrot.slane %v248, 1
        %v309 = vsel %vm301, %v307, %v308
        %v310 = vrot.slane %v249, 1
        %v311 = vsel %vm301, %v308, %v310
        %v312 = vrot.slane %v250, 1
        %v313 = vrot.slane %v251, 1
        %v314 = vsel %vm301, %v312, %v313
        %v315 = vrot.slane %v252, 1
        %v316 = vsel %vm301, %v313, %v315
        %v317 = vrot.slane %v253, 1
        %v318 = vrot.slane %v254, 1
        %v319 = vsel %vm301, %v317, %v318
        %v320 = vrot.slane %v255, 1
        %v321 = vsel %vm301, %v318, %v320
        %v322 = vrot.slane %v256, 1
        %v323 = vrot.slane %v257, 1
        %v324 = vsel %vm301, %v322, %v323
        %v325 = vrot.slane %v258, 1
        %v326 = vsel %vm301, %v323, %v325
        %v327 = vrot.slane %v259, 1
        %v328 = vrot.slane %v260, 1
        %v329 = vsel %vm301, %v327, %v328
        %v330 = vrot.slane %v261, 1
        %v331 = vsel %vm301, %v328, %v330
        %v332 = vrot.slane %v262, 1
        %v333 = vrot.slane %v263, 1
        %v334 = vsel %vm301, %v332, %v333
        %v335 = vrot.slane %v264, 1
        %v336 = vsel %vm301, %v333, %v335
        %v337 = vrot.slane %v265, 1
        %v338 = vrot.slane %v266, 1
        %v339 = vsel %vm301, %v337, %v338
        %v340 = vrot.slane %v267, 1
        %v341 = vsel %vm301, %v338, %v340
        %v358 = vpack.c.bf16 %v306, %v304
        %v359 = vpack.c.bf16 %v311, %v309
        %v360 = vpack.c.bf16 %v316, %v314
        %v361 = vpack.c.bf16 %v321, %v319
        %v362 = vpack.c.bf16 %v326, %v324
        %v363 = vpack.c.bf16 %v331, %v329
        %v364 = vpack.c.bf16 %v336, %v334
        %v365 = vpack.c.bf16 %v341, %v339
        %s366 = scalar_lea.vmem %s1, 2
        %v367 = vld [vmem:[%s366] sm:$0x3]
        %vm368 = vcmask 31744
        %v370 = vsel %vm368, %v358, 0
        %v373 = vsel %vm368, %v359, 0
        %v376 = vsel %vm368, %v360, 0
        %v379 = vsel %vm368, %v361, 0
        %v382 = vsel %vm368, %v362, 0
        %v385 = vsel %vm368, %v363, 0
        %v388 = vsel %vm368, %v364, 0
        %v391 = vsel %vm368, %v365, 0
        %vm393 = vcmask 1041408
        %v395 = vsel %vm393, %v367, 0
        %397 = vmatprep.subr.bf16.mxu0 0
        %398 = vmatpush1.bf16.msra.mxu0 %v395
        %399 = vmatprep.subr.bf16.mxu0 0
        %400 = vmatpush1.bf16.msra.mxu0 0
        %401 = vmatprep.subr.bf16.mxu0 0
        %402 = vmatpush1.bf16.msra.mxu0 0
        %403 = vmatprep.subr.bf16.mxu0 0
        %404 = vmatpush1.bf16.msra.mxu0 0
        %405 = vmatprep.subr.bf16.mxu0 0
        %406 = vmatpush1.bf16.msra.mxu0 0
        %407 = vmatprep.subr.bf16.mxu0 0
        %408 = vmatpush1.bf16.msra.mxu0 0
        %409 = vmatprep.subr.bf16.mxu0 0
        %410 = vmatpush1.bf16.msra.mxu0 0
        %411 = vmatprep.subr.bf16.mxu0 0
        %412 = vmatpush1.bf16.msra.mxu0 0
        %413 = vmatprep.subr.bf16.mxu0 0
        %414 = vmatpush1.bf16.msra.mxu0 0
        %415 = vmatprep.subr.bf16.mxu0 0
        %416 = vmatpush1.bf16.msra.mxu0 0
        %417 = vmatprep.subr.bf16.mxu0 0
        %418 = vmatpush1.bf16.msra.mxu0 0
        %419 = vmatprep.subr.bf16.mxu0 0
        %420 = vmatpush1.bf16.msra.mxu0 0
        %421 = vmatprep.subr.bf16.mxu0 0
        %422 = vmatpush1.bf16.msra.mxu0 0
        %423 = vmatprep.subr.bf16.mxu0 0
        %424 = vmatpush1.bf16.msra.mxu0 0
        %425 = vmatprep.subr.bf16.mxu0 0
        %426 = vmatpush1.bf16.msra.mxu0 0
        %427 = vmatprep.subr.bf16.mxu0 0
        %428 = vmatpush1.bf16.msra.mxu0 0
        %429 = vmatprep.mubr.bf16.mxu0 0
        %430 = vmatmul.mubr.bf16.gmra.mrb[0].mxu0 %v370
        %v431 = vpop.f32.mrb[0].mxu0
        %v432 = vadd.f32 0.0, %v431
        %v433 = vpop.f32.mrb[0].mxu0
        %v434 = vpop.f32.mrb[0].mxu0
        %v435 = vadd.f32 0.0, %v434
        %v436 = vpop.f32.mrb[0].mxu0
        %437 = vmatprep.mubr.bf16.mxu0 0
        %438 = vmatmul.mubr.bf16.gmra.mrb[0].mxu0 %v373
        %v439 = vpop.f32.mrb[0].mxu0
        %v440 = vadd.f32 0.0, %v439
        %v441 = vpop.f32.mrb[0].mxu0
        %v442 = vpop.f32.mrb[0].mxu0
        %v443 = vadd.f32 0.0, %v442
        %v444 = vpop.f32.mrb[0].mxu0
        %445 = vmatprep.mubr.bf16.mxu0 0
        %446 = vmatmul.mubr.bf16.gmra.mrb[0].mxu0 %v376
        %v447 = vpop.f32.mrb[0].mxu0
        %v448 = vadd.f32 0.0, %v447
        %v449 = vpop.f32.mrb[0].mxu0
        %v450 = vpop.f32.mrb[0].mxu0
        %v451 = vadd.f32 0.0, %v450
        %v452 = vpop.f32.mrb[0].mxu0
        %453 = vmatprep.mubr.bf16.mxu0 0
        %454 = vmatmul.mubr.bf16.gmra.mrb[0].mxu0 %v379
        %v455 = vpop.f32.mrb[0].mxu0
        %v456 = vadd.f32 0.0, %v455
        %v457 = vpop.f32.mrb[0].mxu0
        %v458 = vpop.f32.mrb[0].mxu0
        %v459 = vadd.f32 0.0, %v458
        %v460 = vpop.f32.mrb[0].mxu0
        %461 = vmatprep.mubr.bf16.mxu0 0
        %462 = vmatmul.mubr.bf16.gmra.mrb[0].mxu0 %v382
        %v463 = vpop.f32.mrb[0].mxu0
        %v464 = vadd.f32 0.0, %v463
        %v465 = vpop.f32.mrb[0].mxu0
        %v466 = vpop.f32.mrb[0].mxu0
        %v467 = vadd.f32 0.0, %v466
        %v468 = vpop.f32.mrb[0].mxu0
        %469 = vmatprep.mubr.bf16.mxu0 0
        %470 = vmatmul.mubr.bf16.gmra.mrb[0].mxu0 %v385
        %v471 = vpop.f32.mrb[0].mxu0
        %v472 = vadd.f32 0.0, %v471
        %v473 = vpop.f32.mrb[0].mxu0
        %v474 = vpop.f32.mrb[0].mxu0
        %v475 = vadd.f32 0.0, %v474
        %v476 = vpop.f32.mrb[0].mxu0
        %477 = vmatprep.mubr.bf16.mxu0 0
        %478 = vmatmul.mubr.bf16.gmra.mrb[0].mxu0 %v388
        %v479 = vpop.f32.mrb[0].mxu0
        %v480 = vadd.f32 0.0, %v479
        %v481 = vpop.f32.mrb[0].mxu0
        %v482 = vpop.f32.mrb[0].mxu0
        %v483 = vadd.f32 0.0, %v482
        %v484 = vpop.f32.mrb[0].mxu0
        %485 = vmatprep.mubr.bf16.mxu0 0
        %486 = vmatmul.mubr.bf16.gmra.mrb[0].mxu0 %v391
        %v487 = vpop.f32.mrb[0].mxu0
        %v488 = vadd.f32 0.0, %v487
        %v489 = vpop.f32.mrb[0].mxu0
        %v490 = vpop.f32.mrb[0].mxu0
        %v491 = vadd.f32 0.0, %v490
        %v492 = vpop.f32.mrb[0].mxu0
        %493 = vdwg.mxu0
        %v495 = vsel %vm368, %v268, 0
        %v498 = vsel %vm368, %v269, 0
        %v501 = vsel %vm368, %v270, 0
        %v504 = vsel %vm368, %v271, 0
        %v507 = vsel %vm368, %v272, 0
        %v510 = vsel %vm368, %v273, 0
        %v513 = vsel %vm368, %v274, 0
        %v516 = vsel %vm368, %v275, 0
        %v519 = vsel %vm393, %v276, 0
        %521 = vmatprep.subr.bf16.mxu0 0
        %522 = vmatpush1.bf16.msra.mxu0 %v519
        %523 = vmatprep.subr.bf16.mxu0 0
        %524 = vmatpush1.bf16.msra.mxu0 0
        %525 = vmatprep.subr.bf16.mxu0 0
        %526 = vmatpush1.bf16.msra.mxu0 0
        %527 = vmatprep.subr.bf16.mxu0 0
        %528 = vmatpush1.bf16.msra.mxu0 0
        %529 = vmatprep.subr.bf16.mxu0 0
        %530 = vmatpush1.bf16.msra.mxu0 0
        %531 = vmatprep.subr.bf16.mxu0 0
        %532 = vmatpush1.bf16.msra.mxu0 0
        %533 = vmatprep.subr.bf16.mxu0 0
        %534 = vmatpush1.bf16.msra.mxu0 0
        %535 = vmatprep.subr.bf16.mxu0 0
        %536 = vmatpush1.bf16.msra.mxu0 0
        %537 = vmatprep.subr.bf16.mxu0 0
        %538 = vmatpush1.bf16.msra.mxu0 0
        %539 = vmatprep.subr.bf16.mxu0 0
        %540 = vmatpush1.bf16.msra.mxu0 0
        %541 = vmatprep.subr.bf16.mxu0 0
        %542 = vmatpush1.bf16.msra.mxu0 0
        %543 = vmatprep.subr.bf16.mxu0 0
        %544 = vmatpush1.bf16.msra.mxu0 0
        %545 = vmatprep.subr.bf16.mxu0 0
        %546 = vmatpush1.bf16.msra.mxu0 0
        %547 = vmatprep.subr.bf16.mxu0 0
        %548 = vmatpush1.bf16.msra.mxu0 0
        %549 = vmatprep.subr.bf16.mxu0 0
        %550 = vmatpush1.bf16.msra.mxu0 0
        %551 = vmatprep.subr.bf16.mxu0 0
        %552 = vmatpush1.bf16.msra.mxu0 0
        %553 = vmatprep.mubr.bf16.mxu0 0
        %554 = vmatmul.mubr.bf16.gmra.mrb[0].mxu0 %v495
        %v555 = vpop.f32.mrb[0].mxu0
        %v556 = vadd.f32 %v432, %v555
        %v557 = vpop.f32.mrb[0].mxu0
        %v558 = vpop.f32.mrb[0].mxu0
        %v559 = vadd.f32 %v435, %v558
        %v560 = vpop.f32.mrb[0].mxu0
        %561 = vmatprep.mubr.bf16.mxu0 0
        %562 = vmatmul.mubr.bf16.gmra.mrb[0].mxu0 %v498
        %v563 = vpop.f32.mrb[0].mxu0
        %v564 = vadd.f32 %v440, %v563
        %v565 = vpop.f32.mrb[0].mxu0
        %v566 = vpop.f32.mrb[0].mxu0
        %v567 = vadd.f32 %v443, %v566
        %v568 = vpop.f32.mrb[0].mxu0
        %569 = vmatprep.mubr.bf16.mxu0 0
        %570 = vmatmul.mubr.bf16.gmra.mrb[0].mxu0 %v501
        %v571 = vpop.f32.mrb[0].mxu0
        %v572 = vadd.f32 %v448, %v571
        %v573 = vpop.f32.mrb[0].mxu0
        %v574 = vpop.f32.mrb[0].mxu0
        %v575 = vadd.f32 %v451, %v574
        %v576 = vpop.f32.mrb[0].mxu0
        %577 = vmatprep.mubr.bf16.mxu0 0
        %578 = vmatmul.mubr.bf16.gmra.mrb[0].mxu0 %v504
        %v579 = vpop.f32.mrb[0].mxu0
        %v580 = vadd.f32 %v456, %v579
        %v581 = vpop.f32.mrb[0].mxu0
        %v582 = vpop.f32.mrb[0].mxu0
        %v583 = vadd.f32 %v459, %v582
        %v584 = vpop.f32.mrb[0].mxu0
        %585 = vmatprep.mubr.bf16.mxu0 0
        %586 = vmatmul.mubr.bf16.gmra.mrb[0].mxu0 %v507
        %v587 = vpop.f32.mrb[0].mxu0
        %v588 = vadd.f32 %v464, %v587
        %v589 = vpop.f32.mrb[0].mxu0
        %v590 = vpop.f32.mrb[0].mxu0
        %v591 = vadd.f32 %v467, %v590
        %v592 = vpop.f32.mrb[0].mxu0
        %593 = vmatprep.mubr.bf16.mxu0 0
        %594 = vmatmul.mubr.bf16.gmra.mrb[0].mxu0 %v510
        %v595 = vpop.f32.mrb[0].mxu0
        %v596 = vadd.f32 %v472, %v595
        %v597 = vpop.f32.mrb[0].mxu0
        %v598 = vpop.f32.mrb[0].mxu0
        %v599 = vadd.f32 %v475, %v598
        %v600 = vpop.f32.mrb[0].mxu0
        %601 = vmatprep.mubr.bf16.mxu0 0
        %602 = vmatmul.mubr.bf16.gmra.mrb[0].mxu0 %v513
        %v603 = vpop.f32.mrb[0].mxu0
        %v604 = vadd.f32 %v480, %v603
        %v605 = vpop.f32.mrb[0].mxu0
        %v606 = vpop.f32.mrb[0].mxu0
        %v607 = vadd.f32 %v483, %v606
        %v608 = vpop.f32.mrb[0].mxu0
        %609 = vmatprep.mubr.bf16.mxu0 0
        %610 = vmatmul.mubr.bf16.gmra.mrb[0].mxu0 %v516
        %v611 = vpop.f32.mrb[0].mxu0
        %v612 = vadd.f32 %v488, %v611
        %v613 = vpop.f32.mrb[0].mxu0
        %v614 = vpop.f32.mrb[0].mxu0
        %v615 = vadd.f32 %v491, %v614
        %v616 = vpop.f32.mrb[0].mxu0
        %617 = vdwg.mxu0
        %vm618 = vcmask 1045504
        %v619 = vrot.slane %v244, 2
        %v620 = vrot.slane %v245, 2
        %v621 = vsel %vm618, %v619, %v620
        %v622 = vrot.slane %v246, 2
        %v623 = vsel %vm618, %v620, %v622
        %v624 = vrot.slane %v247, 2
        %v625 = vrot.slane %v248, 2
        %v626 = vsel %vm618, %v624, %v625
        %v627 = vrot.slane %v249, 2
        %v628 = vsel %vm618, %v625, %v627
        %v629 = vrot.slane %v250, 2
        %v630 = vrot.slane %v251, 2
        %v631 = vsel %vm618, %v629, %v630
        %v632 = vrot.slane %v252, 2
        %v633 = vsel %vm618, %v630, %v632
        %v634 = vrot.slane %v253, 2
        %v635 = vrot.slane %v254, 2
        %v636 = vsel %vm618, %v634, %v635
        %v637 = vrot.slane %v255, 2
        %v638 = vsel %vm618, %v635, %v637
        %v639 = vrot.slane %v256, 2
        %v640 = vrot.slane %v257, 2
        %v641 = vsel %vm618, %v639, %v640
        %v642 = vrot.slane %v258, 2
        %v643 = vsel %vm618, %v640, %v642
        %v644 = vrot.slane %v259, 2
        %v645 = vrot.slane %v260, 2
        %v646 = vsel %vm618, %v644, %v645
        %v647 = vrot.slane %v261, 2
        %v648 = vsel %vm618, %v645, %v647
        %v649 = vrot.slane %v262, 2
        %v650 = vrot.slane %v263, 2
        %v651 = vsel %vm618, %v649, %v650
        %v652 = vrot.slane %v264, 2
        %v653 = vsel %vm618, %v650, %v652
        %v654 = vrot.slane %v265, 2
        %v655 = vrot.slane %v266, 2
        %v656 = vsel %vm618, %v654, %v655
        %v657 = vrot.slane %v267, 2
        %v658 = vsel %vm618, %v655, %v657
        %v675 = vpack.c.bf16 %v623, %v621
        %v676 = vpack.c.bf16 %v628, %v626
        %v677 = vpack.c.bf16 %v633, %v631
        %v678 = vpack.c.bf16 %v638, %v636
        %v679 = vpack.c.bf16 %v643, %v641
        %v680 = vpack.c.bf16 %v648, %v646
        %v681 = vpack.c.bf16 %v653, %v651
        %v682 = vpack.c.bf16 %v658, %v656
        %s683 = scalar_lea.vmem %s1, 4
        %v684 = vld [vmem:[%s683] sm:$0x3]
        %v686 = vsel %vm368, %v675, 0
        %v689 = vsel %vm368, %v676, 0
        %v692 = vsel %vm368, %v677, 0
        %v695 = vsel %vm368, %v678, 0
        %v698 = vsel %vm368, %v679, 0
        %v701 = vsel %vm368, %v680, 0
        %v704 = vsel %vm368, %v681, 0
        %v707 = vsel %vm368, %v682, 0
        %v710 = vsel %vm393, %v684, 0
        %712 = vmatprep.subr.bf16.mxu0 0
        %713 = vmatpush1.bf16.msra.mxu0 %v710
        %714 = vmatprep.subr.bf16.mxu0 0
        %715 = vmatpush1.bf16.msra.mxu0 0
        %716 = vmatprep.subr.bf16.mxu0 0
        %717 = vmatpush1.bf16.msra.mxu0 0
        %718 = vmatprep.subr.bf16.mxu0 0
        %719 = vmatpush1.bf16.msra.mxu0 0
        %720 = vmatprep.subr.bf16.mxu0 0
        %721 = vmatpush1.bf16.msra.mxu0 0
        %722 = vmatprep.subr.bf16.mxu0 0
        %723 = vmatpush1.bf16.msra.mxu0 0
        %724 = vmatprep.subr.bf16.mxu0 0
        %725 = vmatpush1.bf16.msra.mxu0 0
        %726 = vmatprep.subr.bf16.mxu0 0
        %727 = vmatpush1.bf16.msra.mxu0 0
        %728 = vmatprep.subr.bf16.mxu0 0
        %729 = vmatpush1.bf16.msra.mxu0 0
        %730 = vmatprep.subr.bf16.mxu0 0
        %731 = vmatpush1.bf16.msra.mxu0 0
        %732 = vmatprep.subr.bf16.mxu0 0
        %733 = vmatpush1.bf16.msra.mxu0 0
        %734 = vmatprep.subr.bf16.mxu0 0
        %735 = vmatpush1.bf16.msra.mxu0 0
        %736 = vmatprep.subr.bf16.mxu0 0
        %737 = vmatpush1.bf16.msra.mxu0 0
        %738 = vmatprep.subr.bf16.mxu0 0
        %739 = vmatpush1.bf16.msra.mxu0 0
        %740 = vmatprep.subr.bf16.mxu0 0
        %741 = vmatpush1.bf16.msra.mxu0 0
        %742 = vmatprep.subr.bf16.mxu0 0
        %743 = vmatpush1.bf16.msra.mxu0 0
        %744 = vmatprep.mubr.bf16.mxu0 0
        %745 = vmatmul.mubr.bf16.gmra.mrb[0].mxu0 %v686
        %v746 = vpop.f32.mrb[0].mxu0
        %v747 = vadd.f32 0.0, %v746
        %v748 = vpop.f32.mrb[0].mxu0
        %v749 = vpop.f32.mrb[0].mxu0
        %v750 = vadd.f32 0.0, %v749
        %v751 = vpop.f32.mrb[0].mxu0
        %752 = vmatprep.mubr.bf16.mxu0 0
        %753 = vmatmul.mubr.bf16.gmra.mrb[0].mxu0 %v689
        %v754 = vpop.f32.mrb[0].mxu0
        %v755 = vadd.f32 0.0, %v754
        %v756 = vpop.f32.mrb[0].mxu0
        %v757 = vpop.f32.mrb[0].mxu0
        %v758 = vadd.f32 0.0, %v757
        %v759 = vpop.f32.mrb[0].mxu0
        %760 = vmatprep.mubr.bf16.mxu0 0
        %761 = vmatmul.mubr.bf16.gmra.mrb[0].mxu0 %v692
        %v762 = vpop.f32.mrb[0].mxu0
        %v763 = vadd.f32 0.0, %v762
        %v764 = vpop.f32.mrb[0].mxu0
        %v765 = vpop.f32.mrb[0].mxu0
        %v766 = vadd.f32 0.0, %v765
        %v767 = vpop.f32.mrb[0].mxu0
        %768 = vmatprep.mubr.bf16.mxu0 0
        %769 = vmatmul.mubr.bf16.gmra.mrb[0].mxu0 %v695
        %v770 = vpop.f32.mrb[0].mxu0
        %v771 = vadd.f32 0.0, %v770
        %v772 = vpop.f32.mrb[0].mxu0
        %v773 = vpop.f32.mrb[0].mxu0
        %v774 = vadd.f32 0.0, %v773
        %v775 = vpop.f32.mrb[0].mxu0
        %776 = vmatprep.mubr.bf16.mxu0 0
        %777 = vmatmul.mubr.bf16.gmra.mrb[0].mxu0 %v698
        %v778 = vpop.f32.mrb[0].mxu0
        %v779 = vadd.f32 0.0, %v778
        %v780 = vpop.f32.mrb[0].mxu0
        %v781 = vpop.f32.mrb[0].mxu0
        %v782 = vadd.f32 0.0, %v781
        %v783 = vpop.f32.mrb[0].mxu0
        %784 = vmatprep.mubr.bf16.mxu0 0
        %785 = vmatmul.mubr.bf16.gmra.mrb[0].mxu0 %v701
        %v786 = vpop.f32.mrb[0].mxu0
        %v787 = vadd.f32 0.0, %v786
        %v788 = vpop.f32.mrb[0].mxu0
        %v789 = vpop.f32.mrb[0].mxu0
        %v790 = vadd.f32 0.0, %v789
        %v791 = vpop.f32.mrb[0].mxu0
        %792 = vmatprep.mubr.bf16.mxu0 0
        %793 = vmatmul.mubr.bf16.gmra.mrb[0].mxu0 %v704
        %v794 = vpop.f32.mrb[0].mxu0
        %v795 = vadd.f32 0.0, %v794
        %v796 = vpop.f32.mrb[0].mxu0
        %v797 = vpop.f32.mrb[0].mxu0
        %v798 = vadd.f32 0.0, %v797
        %v799 = vpop.f32.mrb[0].mxu0
        %800 = vmatprep.mubr.bf16.mxu0 0
        %801 = vmatmul.mubr.bf16.gmra.mrb[0].mxu0 %v707
        %v802 = vpop.f32.mrb[0].mxu0
        %v803 = vadd.f32 0.0, %v802
        %v804 = vpop.f32.mrb[0].mxu0
        %v805 = vpop.f32.mrb[0].mxu0
        %v806 = vadd.f32 0.0, %v805
        %v807 = vpop.f32.mrb[0].mxu0
        %808 = vdwg.mxu0
        %v809 = vadd.f32 %v556, %v747
        %v810 = vadd.f32 %v559, %v750
        %v811 = vadd.f32 %v564, %v755
        %v812 = vadd.f32 %v567, %v758
        %v813 = vadd.f32 %v572, %v763
        %v814 = vadd.f32 %v575, %v766
        %v815 = vadd.f32 %v580, %v771
        %v816 = vadd.f32 %v583, %v774
        %v817 = vadd.f32 %v588, %v779
        %v818 = vadd.f32 %v591, %v782
        %v819 = vadd.f32 %v596, %v787
        %v820 = vadd.f32 %v599, %v790
        %v821 = vadd.f32 %v604, %v795
        %v822 = vadd.f32 %v607, %v798
        %v823 = vadd.f32 %v612, %v803
        %v824 = vadd.f32 %v615, %v806
        %s825 = sadd.s32 %s241, 1
        %s826 = smul.u32 %s825, 24
        %s827 = scalar_lea.vmem %s233, %s826
        %v828 = vld [vmem:[%s827] sm:$0xff]
        %v829 = vld [vmem:[%s827 + $0x8] sm:$0xff]
        %v830 = vld [vmem:[%s827 + $0x10] sm:$0x3]
        %v831 = vld [vmem:[%s827 + $0x18] sm:$0xff]
        %v832 = vld [vmem:[%s827 + $0x20] sm:$0xff]
        %v833 = vld [vmem:[%s827 + $0x28] sm:$0x3]
        %v834 = vld [vmem:[%s827 + $0x30] sm:$0xff]
        %v835 = vld [vmem:[%s827 + $0x38] sm:$0xff]
        %v836 = vld [vmem:[%s827 + $0x40] sm:$0x3]
        %v837 = vld [vmem:[%s827 + $0x48] sm:$0xff]
        %v838 = vld [vmem:[%s827 + $0x50] sm:$0xff]
        %v839 = vld [vmem:[%s827 + $0x58] sm:$0x3]
        %v840 = vld [vmem:[%s827 + $0x60] sm:$0xff]
        %v841 = vld [vmem:[%s827 + $0x68] sm:$0xff]
        %v842 = vld [vmem:[%s827 + $0x70] sm:$0x3]
        %v843 = vld [vmem:[%s827 + $0x78] sm:$0xff]
        %v844 = vld [vmem:[%s827 + $0x80] sm:$0xff]
        %v845 = vld [vmem:[%s827 + $0x88] sm:$0x3]
        %v846 = vld [vmem:[%s827 + $0x90] sm:$0xff]
        %v847 = vld [vmem:[%s827 + $0x98] sm:$0xff]
        %v848 = vld [vmem:[%s827 + $0xa0] sm:$0x3]
        %v849 = vld [vmem:[%s827 + $0xa8] sm:$0xff]
        %v850 = vld [vmem:[%s827 + $0xb0] sm:$0xff]
        %v851 = vld [vmem:[%s827 + $0xb8] sm:$0x3]
        %v852 = vpack.c.bf16 %v829, %v828
        %v853 = vpack.c.bf16 %v832, %v831
        %v854 = vpack.c.bf16 %v835, %v834
        %v855 = vpack.c.bf16 %v838, %v837
        %v856 = vpack.c.bf16 %v841, %v840
        %v857 = vpack.c.bf16 %v844, %v843
        %v858 = vpack.c.bf16 %v847, %v846
        %v859 = vpack.c.bf16 %v850, %v849
        %s860 = scalar_lea.vmem %s1, 6
        %v861 = vld [vmem:[%s860] sm:$0x3]
        %v863 = vsel %vm368, %v852, 0
        %v866 = vsel %vm368, %v853, 0
        %v869 = vsel %vm368, %v854, 0
        %v872 = vsel %vm368, %v855, 0
        %v875 = vsel %vm368, %v856, 0
        %v878 = vsel %vm368, %v857, 0
        %v881 = vsel %vm368, %v858, 0
        %v884 = vsel %vm368, %v859, 0
        %v887 = vsel %vm393, %v861, 0
        %889 = vmatprep.subr.bf16.mxu0 0
        %890 = vmatpush1.bf16.msra.mxu0 %v887
        %891 = vmatprep.subr.bf16.mxu0 0
        %892 = vmatpush1.bf16.msra.mxu0 0
        %893 = vmatprep.subr.bf16.mxu0 0
        %894 = vmatpush1.bf16.msra.mxu0 0
        %895 = vmatprep.subr.bf16.mxu0 0
        %896 = vmatpush1.bf16.msra.mxu0 0
        %897 = vmatprep.subr.bf16.mxu0 0
        %898 = vmatpush1.bf16.msra.mxu0 0
        %899 = vmatprep.subr.bf16.mxu0 0
        %900 = vmatpush1.bf16.msra.mxu0 0
        %901 = vmatprep.subr.bf16.mxu0 0
        %902 = vmatpush1.bf16.msra.mxu0 0
        %903 = vmatprep.subr.bf16.mxu0 0
        %904 = vmatpush1.bf16.msra.mxu0 0
        %905 = vmatprep.subr.bf16.mxu0 0
        %906 = vmatpush1.bf16.msra.mxu0 0
        %907 = vmatprep.subr.bf16.mxu0 0
        %908 = vmatpush1.bf16.msra.mxu0 0
        %909 = vmatprep.subr.bf16.mxu0 0
        %910 = vmatpush1.bf16.msra.mxu0 0
        %911 = vmatprep.subr.bf16.mxu0 0
        %912 = vmatpush1.bf16.msra.mxu0 0
        %913 = vmatprep.subr.bf16.mxu0 0
        %914 = vmatpush1.bf16.msra.mxu0 0
        %915 = vmatprep.subr.bf16.mxu0 0
        %916 = vmatpush1.bf16.msra.mxu0 0
        %917 = vmatprep.subr.bf16.mxu0 0
        %918 = vmatpush1.bf16.msra.mxu0 0
        %919 = vmatprep.subr.bf16.mxu0 0
        %920 = vmatpush1.bf16.msra.mxu0 0
        %921 = vmatprep.mubr.bf16.mxu0 0
        %922 = vmatmul.mubr.bf16.gmra.mrb[0].mxu0 %v863
        %v923 = vpop.f32.mrb[0].mxu0
        %v924 = vadd.f32 0.0, %v923
        %v925 = vpop.f32.mrb[0].mxu0
        %v926 = vpop.f32.mrb[0].mxu0
        %v927 = vadd.f32 0.0, %v926
        %v928 = vpop.f32.mrb[0].mxu0
        %929 = vmatprep.mubr.bf16.mxu0 0
        %930 = vmatmul.mubr.bf16.gmra.mrb[0].mxu0 %v866
        %v931 = vpop.f32.mrb[0].mxu0
        %v932 = vadd.f32 0.0, %v931
        %v933 = vpop.f32.mrb[0].mxu0
        %v934 = vpop.f32.mrb[0].mxu0
        %v935 = vadd.f32 0.0, %v934
        %v936 = vpop.f32.mrb[0].mxu0
        %937 = vmatprep.mubr.bf16.mxu0 0
        %938 = vmatmul.mubr.bf16.gmra.mrb[0].mxu0 %v869
        %v939 = vpop.f32.mrb[0].mxu0
        %v940 = vadd.f32 0.0, %v939
        %v941 = vpop.f32.mrb[0].mxu0
        %v942 = vpop.f32.mrb[0].mxu0
        %v943 = vadd.f32 0.0, %v942
        %v944 = vpop.f32.mrb[0].mxu0
        %945 = vmatprep.mubr.bf16.mxu0 0
        %946 = vmatmul.mubr.bf16.gmra.mrb[0].mxu0 %v872
        %v947 = vpop.f32.mrb[0].mxu0
        %v948 = vadd.f32 0.0, %v947
        %v949 = vpop.f32.mrb[0].mxu0
        %v950 = vpop.f32.mrb[0].mxu0
        %v951 = vadd.f32 0.0, %v950
        %v952 = vpop.f32.mrb[0].mxu0
        %953 = vmatprep.mubr.bf16.mxu0 0
        %954 = vmatmul.mubr.bf16.gmra.mrb[0].mxu0 %v875
        %v955 = vpop.f32.mrb[0].mxu0
        %v956 = vadd.f32 0.0, %v955
        %v957 = vpop.f32.mrb[0].mxu0
        %v958 = vpop.f32.mrb[0].mxu0
        %v959 = vadd.f32 0.0, %v958
        %v960 = vpop.f32.mrb[0].mxu0
        %961 = vmatprep.mubr.bf16.mxu0 0
        %962 = vmatmul.mubr.bf16.gmra.mrb[0].mxu0 %v878
        %v963 = vpop.f32.mrb[0].mxu0
        %v964 = vadd.f32 0.0, %v963
        %v965 = vpop.f32.mrb[0].mxu0
        %v966 = vpop.f32.mrb[0].mxu0
        %v967 = vadd.f32 0.0, %v966
        %v968 = vpop.f32.mrb[0].mxu0
        %969 = vmatprep.mubr.bf16.mxu0 0
        %970 = vmatmul.mubr.bf16.gmra.mrb[0].mxu0 %v881
        %v971 = vpop.f32.mrb[0].mxu0
        %v972 = vadd.f32 0.0, %v971
        %v973 = vpop.f32.mrb[0].mxu0
        %v974 = vpop.f32.mrb[0].mxu0
        %v975 = vadd.f32 0.0, %v974
        %v976 = vpop.f32.mrb[0].mxu0
        %977 = vmatprep.mubr.bf16.mxu0 0
        %978 = vmatmul.mubr.bf16.gmra.mrb[0].mxu0 %v884
        %v979 = vpop.f32.mrb[0].mxu0
        %v980 = vadd.f32 0.0, %v979
        %v981 = vpop.f32.mrb[0].mxu0
        %v982 = vpop.f32.mrb[0].mxu0
        %v983 = vadd.f32 0.0, %v982
        %v984 = vpop.f32.mrb[0].mxu0
        %985 = vdwg.mxu0
        %v986 = vadd.f32 %v809, %v924
        %v987 = vadd.f32 %v810, %v927
        %v988 = vadd.f32 %v811, %v932
        %v989 = vadd.f32 %v812, %v935
        %v990 = vadd.f32 %v813, %v940
        %v991 = vadd.f32 %v814, %v943
        %v992 = vadd.f32 %v815, %v948
        %v993 = vadd.f32 %v816, %v951
        %v994 = vadd.f32 %v817, %v956
        %v995 = vadd.f32 %v818, %v959
        %v996 = vadd.f32 %v819, %v964
        %v997 = vadd.f32 %v820, %v967
        %v998 = vadd.f32 %v821, %v972
        %v999 = vadd.f32 %v822, %v975
        %v1000 = vadd.f32 %v823, %v980
        %v1001 = vadd.f32 %v824, %v983
        %v1026 = vrot.slane %v828, 1
        %v1027 = vrot.slane %v829, 1
        %v1028 = vsel %vm301, %v1026, %v1027
        %v1029 = vrot.slane %v830, 1
        %v1030 = vsel %vm301, %v1027, %v1029
        %v1031 = vrot.slane %v831, 1
        %v1032 = vrot.slane %v832, 1
        %v1033 = vsel %vm301, %v1031, %v1032
        %v1034 = vrot.slane %v833, 1
        %v1035 = vsel %vm301, %v1032, %v1034
        %v1036 = vrot.slane %v834, 1
        %v1037 = vrot.slane %v835, 1
        %v1038 = vsel %vm301, %v1036, %v1037
        %v1039 = vrot.slane %v836, 1
        %v1040 = vsel %vm301, %v1037, %v1039
        %v1041 = vrot.slane %v837, 1
        %v1042 = vrot.slane %v838, 1
        %v1043 = vsel %vm301, %v1041, %v1042
        %v1044 = vrot.slane %v839, 1
        %v1045 = vsel %vm301, %v1042, %v1044
        %v1046 = vrot.slane %v840, 1
        %v1047 = vrot.slane %v841, 1
        %v1048 = vsel %vm301, %v1046, %v1047
        %v1049 = vrot.slane %v842, 1
        %v1050 = vsel %vm301, %v1047, %v1049
        %v1051 = vrot.slane %v843, 1
        %v1052 = vrot.slane %v844, 1
        %v1053 = vsel %vm301, %v1051, %v1052
        %v1054 = vrot.slane %v845, 1
        %v1055 = vsel %vm301, %v1052, %v1054
        %v1056 = vrot.slane %v846, 1
        %v1057 = vrot.slane %v847, 1
        %v1058 = vsel %vm301, %v1056, %v1057
        %v1059 = vrot.slane %v848, 1
        %v1060 = vsel %vm301, %v1057, %v1059
        %v1061 = vrot.slane %v849, 1
        %v1062 = vrot.slane %v850, 1
        %v1063 = vsel %vm301, %v1061, %v1062
        %v1064 = vrot.slane %v851, 1
        %v1065 = vsel %vm301, %v1062, %v1064
        %v1082 = vpack.c.bf16 %v1030, %v1028
        %v1083 = vpack.c.bf16 %v1035, %v1033
        %v1084 = vpack.c.bf16 %v1040, %v1038
        %v1085 = vpack.c.bf16 %v1045, %v1043
        %v1086 = vpack.c.bf16 %v1050, %v1048
        %v1087 = vpack.c.bf16 %v1055, %v1053
        %v1088 = vpack.c.bf16 %v1060, %v1058
        %v1089 = vpack.c.bf16 %v1065, %v1063
        %s1090 = scalar_lea.vmem %s1, 8
        %v1091 = vld [vmem:[%s1090] sm:$0x3]
        %v1093 = vsel %vm368, %v1082, 0
        %v1096 = vsel %vm368, %v1083, 0
        %v1099 = vsel %vm368, %v1084, 0
        %v1102 = vsel %vm368, %v1085, 0
        %v1105 = vsel %vm368, %v1086, 0
        %v1108 = vsel %vm368, %v1087, 0
        %v1111 = vsel %vm368, %v1088, 0
        %v1114 = vsel %vm368, %v1089, 0
        %v1117 = vsel %vm393, %v1091, 0
        %1119 = vmatprep.subr.bf16.mxu0 0
        %1120 = vmatpush1.bf16.msra.mxu0 %v1117
        %1121 = vmatprep.subr.bf16.mxu0 0
        %1122 = vmatpush1.bf16.msra.mxu0 0
        %1123 = vmatprep.subr.bf16.mxu0 0
        %1124 = vmatpush1.bf16.msra.mxu0 0
        %1125 = vmatprep.subr.bf16.mxu0 0
        %1126 = vmatpush1.bf16.msra.mxu0 0
        %1127 = vmatprep.subr.bf16.mxu0 0
        %1128 = vmatpush1.bf16.msra.mxu0 0
        %1129 = vmatprep.subr.bf16.mxu0 0
        %1130 = vmatpush1.bf16.msra.mxu0 0
        %1131 = vmatprep.subr.bf16.mxu0 0
        %1132 = vmatpush1.bf16.msra.mxu0 0
        %1133 = vmatprep.subr.bf16.mxu0 0
        %1134 = vmatpush1.bf16.msra.mxu0 0
        %1135 = vmatprep.subr.bf16.mxu0 0
        %1136 = vmatpush1.bf16.msra.mxu0 0
        %1137 = vmatprep.subr.bf16.mxu0 0
        %1138 = vmatpush1.bf16.msra.mxu0 0
        %1139 = vmatprep.subr.bf16.mxu0 0
        %1140 = vmatpush1.bf16.msra.mxu0 0
        %1141 = vmatprep.subr.bf16.mxu0 0
        %1142 = vmatpush1.bf16.msra.mxu0 0
        %1143 = vmatprep.subr.bf16.mxu0 0
        %1144 = vmatpush1.bf16.msra.mxu0 0
        %1145 = vmatprep.subr.bf16.mxu0 0
        %1146 = vmatpush1.bf16.msra.mxu0 0
        %1147 = vmatprep.subr.bf16.mxu0 0
        %1148 = vmatpush1.bf16.msra.mxu0 0
        %1149 = vmatprep.subr.bf16.mxu0 0
        %1150 = vmatpush1.bf16.msra.mxu0 0
        %1151 = vmatprep.mubr.bf16.mxu0 0
        %1152 = vmatmul.mubr.bf16.gmra.mrb[0].mxu0 %v1093
        %v1153 = vpop.f32.mrb[0].mxu0
        %v1154 = vadd.f32 0.0, %v1153
        %v1155 = vpop.f32.mrb[0].mxu0
        %v1156 = vpop.f32.mrb[0].mxu0
        %v1157 = vadd.f32 0.0, %v1156
        %v1158 = vpop.f32.mrb[0].mxu0
        %1159 = vmatprep.mubr.bf16.mxu0 0
        %1160 = vmatmul.mubr.bf16.gmra.mrb[0].mxu0 %v1096
        %v1161 = vpop.f32.mrb[0].mxu0
        %v1162 = vadd.f32 0.0, %v1161
        %v1163 = vpop.f32.mrb[0].mxu0
        %v1164 = vpop.f32.mrb[0].mxu0
        %v1165 = vadd.f32 0.0, %v1164
        %v1166 = vpop.f32.mrb[0].mxu0
        %1167 = vmatprep.mubr.bf16.mxu0 0
        %1168 = vmatmul.mubr.bf16.gmra.mrb[0].mxu0 %v1099
        %v1169 = vpop.f32.mrb[0].mxu0
        %v1170 = vadd.f32 0.0, %v1169
        %v1171 = vpop.f32.mrb[0].mxu0
        %v1172 = vpop.f32.mrb[0].mxu0
        %v1173 = vadd.f32 0.0, %v1172
        %v1174 = vpop.f32.mrb[0].mxu0
        %1175 = vmatprep.mubr.bf16.mxu0 0
        %1176 = vmatmul.mubr.bf16.gmra.mrb[0].mxu0 %v1102
        %v1177 = vpop.f32.mrb[0].mxu0
        %v1178 = vadd.f32 0.0, %v1177
        %v1179 = vpop.f32.mrb[0].mxu0
        %v1180 = vpop.f32.mrb[0].mxu0
        %v1181 = vadd.f32 0.0, %v1180
        %v1182 = vpop.f32.mrb[0].mxu0
        %1183 = vmatprep.mubr.bf16.mxu0 0
        %1184 = vmatmul.mubr.bf16.gmra.mrb[0].mxu0 %v1105
        %v1185 = vpop.f32.mrb[0].mxu0
        %v1186 = vadd.f32 0.0, %v1185
        %v1187 = vpop.f32.mrb[0].mxu0
        %v1188 = vpop.f32.mrb[0].mxu0
        %v1189 = vadd.f32 0.0, %v1188
        %v1190 = vpop.f32.mrb[0].mxu0
        %1191 = vmatprep.mubr.bf16.mxu0 0
        %1192 = vmatmul.mubr.bf16.gmra.mrb[0].mxu0 %v1108
        %v1193 = vpop.f32.mrb[0].mxu0
        %v1194 = vadd.f32 0.0, %v1193
        %v1195 = vpop.f32.mrb[0].mxu0
        %v1196 = vpop.f32.mrb[0].mxu0
        %v1197 = vadd.f32 0.0, %v1196
        %v1198 = vpop.f32.mrb[0].mxu0
        %1199 = vmatprep.mubr.bf16.mxu0 0
        %1200 = vmatmul.mubr.bf16.gmra.mrb[0].mxu0 %v1111
        %v1201 = vpop.f32.mrb[0].mxu0
        %v1202 = vadd.f32 0.0, %v1201
        %v1203 = vpop.f32.mrb[0].mxu0
        %v1204 = vpop.f32.mrb[0].mxu0
        %v1205 = vadd.f32 0.0, %v1204
        %v1206 = vpop.f32.mrb[0].mxu0
        %1207 = vmatprep.mubr.bf16.mxu0 0
        %1208 = vmatmul.mubr.bf16.gmra.mrb[0].mxu0 %v1114
        %v1209 = vpop.f32.mrb[0].mxu0
        %v1210 = vadd.f32 0.0, %v1209
        %v1211 = vpop.f32.mrb[0].mxu0
        %v1212 = vpop.f32.mrb[0].mxu0
        %v1213 = vadd.f32 0.0, %v1212
        %v1214 = vpop.f32.mrb[0].mxu0
        %1215 = vdwg.mxu0
        %v1216 = vadd.f32 %v986, %v1154
        %v1217 = vadd.f32 %v987, %v1157
        %v1218 = vadd.f32 %v988, %v1162
        %v1219 = vadd.f32 %v989, %v1165
        %v1220 = vadd.f32 %v990, %v1170
        %v1221 = vadd.f32 %v991, %v1173
        %v1222 = vadd.f32 %v992, %v1178
        %v1223 = vadd.f32 %v993, %v1181
        %v1224 = vadd.f32 %v994, %v1186
        %v1225 = vadd.f32 %v995, %v1189
        %v1226 = vadd.f32 %v996, %v1194
        %v1227 = vadd.f32 %v997, %v1197
        %v1228 = vadd.f32 %v998, %v1202
        %v1229 = vadd.f32 %v999, %v1205
        %v1230 = vadd.f32 %v1000, %v1210
        %v1231 = vadd.f32 %v1001, %v1213
        %v1232 = vrot.slane %v828, 2
        %v1233 = vrot.slane %v829, 2
        %v1234 = vsel %vm618, %v1232, %v1233
        %v1235 = vrot.slane %v830, 2
        %v1236 = vsel %vm618, %v1233, %v1235
        %v1237 = vrot.slane %v831, 2
        %v1238 = vrot.slane %v832, 2
        %v1239 = vsel %vm618, %v1237, %v1238
        %v1240 = vrot.slane %v833, 2
        %v1241 = vsel %vm618, %v1238, %v1240
        %v1242 = vrot.slane %v834, 2
        %v1243 = vrot.slane %v835, 2
        %v1244 = vsel %vm618, %v1242, %v1243
        %v1245 = vrot.slane %v836, 2
        %v1246 = vsel %vm618, %v1243, %v1245
        %v1247 = vrot.slane %v837, 2
        %v1248 = vrot.slane %v838, 2
        %v1249 = vsel %vm618, %v1247, %v1248
        %v1250 = vrot.slane %v839, 2
        %v1251 = vsel %vm618, %v1248, %v1250
        %v1252 = vrot.slane %v840, 2
        %v1253 = vrot.slane %v841, 2
        %v1254 = vsel %vm618, %v1252, %v1253
        %v1255 = vrot.slane %v842, 2
        %v1256 = vsel %vm618, %v1253, %v1255
        %v1257 = vrot.slane %v843, 2
        %v1258 = vrot.slane %v844, 2
        %v1259 = vsel %vm618, %v1257, %v1258
        %v1260 = vrot.slane %v845, 2
        %v1261 = vsel %vm618, %v1258, %v1260
        %v1262 = vrot.slane %v846, 2
        %v1263 = vrot.slane %v847, 2
        %v1264 = vsel %vm618, %v1262, %v1263
        %v1265 = vrot.slane %v848, 2
        %v1266 = vsel %vm618, %v1263, %v1265
        %v1267 = vrot.slane %v849, 2
        %v1268 = vrot.slane %v850, 2
        %v1269 = vsel %vm618, %v1267, %v1268
        %v1270 = vrot.slane %v851, 2
        %v1271 = vsel %vm618, %v1268, %v1270
        %v1288 = vpack.c.bf16 %v1236, %v1234
        %v1289 = vpack.c.bf16 %v1241, %v1239
        %v1290 = vpack.c.bf16 %v1246, %v1244
        %v1291 = vpack.c.bf16 %v1251, %v1249
        %v1292 = vpack.c.bf16 %v1256, %v1254
        %v1293 = vpack.c.bf16 %v1261, %v1259
        %v1294 = vpack.c.bf16 %v1266, %v1264
        %v1295 = vpack.c.bf16 %v1271, %v1269
        %s1296 = scalar_lea.vmem %s1, 10
        %v1297 = vld [vmem:[%s1296] sm:$0x3]
        %v1299 = vsel %vm368, %v1288, 0
        %v1302 = vsel %vm368, %v1289, 0
        %v1305 = vsel %vm368, %v1290, 0
        %v1308 = vsel %vm368, %v1291, 0
        %v1311 = vsel %vm368, %v1292, 0
        %v1314 = vsel %vm368, %v1293, 0
        %v1317 = vsel %vm368, %v1294, 0
        %v1320 = vsel %vm368, %v1295, 0
        %v1323 = vsel %vm393, %v1297, 0
        %1325 = vmatprep.subr.bf16.mxu0 0
        %1326 = vmatpush1.bf16.msra.mxu0 %v1323
        %1327 = vmatprep.subr.bf16.mxu0 0
        %1328 = vmatpush1.bf16.msra.mxu0 0
        %1329 = vmatprep.subr.bf16.mxu0 0
        %1330 = vmatpush1.bf16.msra.mxu0 0
        %1331 = vmatprep.subr.bf16.mxu0 0
        %1332 = vmatpush1.bf16.msra.mxu0 0
        %1333 = vmatprep.subr.bf16.mxu0 0
        %1334 = vmatpush1.bf16.msra.mxu0 0
        %1335 = vmatprep.subr.bf16.mxu0 0
        %1336 = vmatpush1.bf16.msra.mxu0 0
        %1337 = vmatprep.subr.bf16.mxu0 0
        %1338 = vmatpush1.bf16.msra.mxu0 0
        %1339 = vmatprep.subr.bf16.mxu0 0
        %1340 = vmatpush1.bf16.msra.mxu0 0
        %1341 = vmatprep.subr.bf16.mxu0 0
        %1342 = vmatpush1.bf16.msra.mxu0 0
        %1343 = vmatprep.subr.bf16.mxu0 0
        %1344 = vmatpush1.bf16.msra.mxu0 0
        %1345 = vmatprep.subr.bf16.mxu0 0
        %1346 = vmatpush1.bf16.msra.mxu0 0
        %1347 = vmatprep.subr.bf16.mxu0 0
        %1348 = vmatpush1.bf16.msra.mxu0 0
        %1349 = vmatprep.subr.bf16.mxu0 0
        %1350 = vmatpush1.bf16.msra.mxu0 0
        %1351 = vmatprep.subr.bf16.mxu0 0
        %1352 = vmatpush1.bf16.msra.mxu0 0
        %1353 = vmatprep.subr.bf16.mxu0 0
        %1354 = vmatpush1.bf16.msra.mxu0 0
        %1355 = vmatprep.subr.bf16.mxu0 0
        %1356 = vmatpush1.bf16.msra.mxu0 0
        %1357 = vmatprep.mubr.bf16.mxu0 0
        %1358 = vmatmul.mubr.bf16.gmra.mrb[0].mxu0 %v1299
        %v1359 = vpop.f32.mrb[0].mxu0
        %v1360 = vadd.f32 0.0, %v1359
        %v1361 = vpop.f32.mrb[0].mxu0
        %v1362 = vpop.f32.mrb[0].mxu0
        %v1363 = vadd.f32 0.0, %v1362
        %v1364 = vpop.f32.mrb[0].mxu0
        %1365 = vmatprep.mubr.bf16.mxu0 0
        %1366 = vmatmul.mubr.bf16.gmra.mrb[0].mxu0 %v1302
        %v1367 = vpop.f32.mrb[0].mxu0
        %v1368 = vadd.f32 0.0, %v1367
        %v1369 = vpop.f32.mrb[0].mxu0
        %v1370 = vpop.f32.mrb[0].mxu0
        %v1371 = vadd.f32 0.0, %v1370
        %v1372 = vpop.f32.mrb[0].mxu0
        %1373 = vmatprep.mubr.bf16.mxu0 0
        %1374 = vmatmul.mubr.bf16.gmra.mrb[0].mxu0 %v1305
        %v1375 = vpop.f32.mrb[0].mxu0
        %v1376 = vadd.f32 0.0, %v1375
        %v1377 = vpop.f32.mrb[0].mxu0
        %v1378 = vpop.f32.mrb[0].mxu0
        %v1379 = vadd.f32 0.0, %v1378
        %v1380 = vpop.f32.mrb[0].mxu0
        %1381 = vmatprep.mubr.bf16.mxu0 0
        %1382 = vmatmul.mubr.bf16.gmra.mrb[0].mxu0 %v1308
        %v1383 = vpop.f32.mrb[0].mxu0
        %v1384 = vadd.f32 0.0, %v1383
        %v1385 = vpop.f32.mrb[0].mxu0
        %v1386 = vpop.f32.mrb[0].mxu0
        %v1387 = vadd.f32 0.0, %v1386
        %v1388 = vpop.f32.mrb[0].mxu0
        %1389 = vmatprep.mubr.bf16.mxu0 0
        %1390 = vmatmul.mubr.bf16.gmra.mrb[0].mxu0 %v1311
        %v1391 = vpop.f32.mrb[0].mxu0
        %v1392 = vadd.f32 0.0, %v1391
        %v1393 = vpop.f32.mrb[0].mxu0
        %v1394 = vpop.f32.mrb[0].mxu0
        %v1395 = vadd.f32 0.0, %v1394
        %v1396 = vpop.f32.mrb[0].mxu0
        %1397 = vmatprep.mubr.bf16.mxu0 0
        %1398 = vmatmul.mubr.bf16.gmra.mrb[0].mxu0 %v1314
        %v1399 = vpop.f32.mrb[0].mxu0
        %v1400 = vadd.f32 0.0, %v1399
        %v1401 = vpop.f32.mrb[0].mxu0
        %v1402 = vpop.f32.mrb[0].mxu0
        %v1403 = vadd.f32 0.0, %v1402
        %v1404 = vpop.f32.mrb[0].mxu0
        %1405 = vmatprep.mubr.bf16.mxu0 0
        %1406 = vmatmul.mubr.bf16.gmra.mrb[0].mxu0 %v1317
        %v1407 = vpop.f32.mrb[0].mxu0
        %v1408 = vadd.f32 0.0, %v1407
        %v1409 = vpop.f32.mrb[0].mxu0
        %v1410 = vpop.f32.mrb[0].mxu0
        %v1411 = vadd.f32 0.0, %v1410
        %v1412 = vpop.f32.mrb[0].mxu0
        %1413 = vmatprep.mubr.bf16.mxu0 0
        %1414 = vmatmul.mubr.bf16.gmra.mrb[0].mxu0 %v1320
        %v1415 = vpop.f32.mrb[0].mxu0
        %v1416 = vadd.f32 0.0, %v1415
        %v1417 = vpop.f32.mrb[0].mxu0
        %v1418 = vpop.f32.mrb[0].mxu0
        %v1419 = vadd.f32 0.0, %v1418
        %v1420 = vpop.f32.mrb[0].mxu0
        %1421 = vdwg.mxu0
        %v1422 = vadd.f32 %v1216, %v1360
        %v1423 = vadd.f32 %v1217, %v1363
        %v1424 = vadd.f32 %v1218, %v1368
        %v1425 = vadd.f32 %v1219, %v1371
        %v1426 = vadd.f32 %v1220, %v1376
        %v1427 = vadd.f32 %v1221, %v1379
        %v1428 = vadd.f32 %v1222, %v1384
        %v1429 = vadd.f32 %v1223, %v1387
        %v1430 = vadd.f32 %v1224, %v1392
        %v1431 = vadd.f32 %v1225, %v1395
        %v1432 = vadd.f32 %v1226, %v1400
        %v1433 = vadd.f32 %v1227, %v1403
        %v1434 = vadd.f32 %v1228, %v1408
        %v1435 = vadd.f32 %v1229, %v1411
        %v1436 = vadd.f32 %v1230, %v1416
        %v1437 = vadd.f32 %v1231, %v1419
        %s1438 = sadd.s32 %s241, 2
        %s1439 = smul.u32 %s1438, 24
        %s1440 = scalar_lea.vmem %s233, %s1439
        %v1441 = vld [vmem:[%s1440] sm:$0xff]
        %v1442 = vld [vmem:[%s1440 + $0x8] sm:$0xff]
        %v1443 = vld [vmem:[%s1440 + $0x10] sm:$0x3]
        %v1444 = vld [vmem:[%s1440 + $0x18] sm:$0xff]
        %v1445 = vld [vmem:[%s1440 + $0x20] sm:$0xff]
        %v1446 = vld [vmem:[%s1440 + $0x28] sm:$0x3]
        %v1447 = vld [vmem:[%s1440 + $0x30] sm:$0xff]
        %v1448 = vld [vmem:[%s1440 + $0x38] sm:$0xff]
        %v1449 = vld [vmem:[%s1440 + $0x40] sm:$0x3]
        %v1450 = vld [vmem:[%s1440 + $0x48] sm:$0xff]
        %v1451 = vld [vmem:[%s1440 + $0x50] sm:$0xff]
        %v1452 = vld [vmem:[%s1440 + $0x58] sm:$0x3]
        %v1453 = vld [vmem:[%s1440 + $0x60] sm:$0xff]
        %v1454 = vld [vmem:[%s1440 + $0x68] sm:$0xff]
        %v1455 = vld [vmem:[%s1440 + $0x70] sm:$0x3]
        %v1456 = vld [vmem:[%s1440 + $0x78] sm:$0xff]
        %v1457 = vld [vmem:[%s1440 + $0x80] sm:$0xff]
        %v1458 = vld [vmem:[%s1440 + $0x88] sm:$0x3]
        %v1459 = vld [vmem:[%s1440 + $0x90] sm:$0xff]
        %v1460 = vld [vmem:[%s1440 + $0x98] sm:$0xff]
        %v1461 = vld [vmem:[%s1440 + $0xa0] sm:$0x3]
        %v1462 = vld [vmem:[%s1440 + $0xa8] sm:$0xff]
        %v1463 = vld [vmem:[%s1440 + $0xb0] sm:$0xff]
        %v1464 = vld [vmem:[%s1440 + $0xb8] sm:$0x3]
        %v1465 = vpack.c.bf16 %v1442, %v1441
        %v1466 = vpack.c.bf16 %v1445, %v1444
        %v1467 = vpack.c.bf16 %v1448, %v1447
        %v1468 = vpack.c.bf16 %v1451, %v1450
        %v1469 = vpack.c.bf16 %v1454, %v1453
        %v1470 = vpack.c.bf16 %v1457, %v1456
        %v1471 = vpack.c.bf16 %v1460, %v1459
        %v1472 = vpack.c.bf16 %v1463, %v1462
        %s1473 = scalar_lea.vmem %s1, 12
        %v1474 = vld [vmem:[%s1473] sm:$0x3]
        %v1476 = vsel %vm368, %v1465, 0
        %v1479 = vsel %vm368, %v1466, 0
        %v1482 = vsel %vm368, %v1467, 0
        %v1485 = vsel %vm368, %v1468, 0
        %v1488 = vsel %vm368, %v1469, 0
        %v1491 = vsel %vm368, %v1470, 0
        %v1494 = vsel %vm368, %v1471, 0
        %v1497 = vsel %vm368, %v1472, 0
        %v1500 = vsel %vm393, %v1474, 0
        %1502 = vmatprep.subr.bf16.mxu0 0
        %1503 = vmatpush1.bf16.msra.mxu0 %v1500
        %1504 = vmatprep.subr.bf16.mxu0 0
        %1505 = vmatpush1.bf16.msra.mxu0 0
        %1506 = vmatprep.subr.bf16.mxu0 0
        %1507 = vmatpush1.bf16.msra.mxu0 0
        %1508 = vmatprep.subr.bf16.mxu0 0
        %1509 = vmatpush1.bf16.msra.mxu0 0
        %1510 = vmatprep.subr.bf16.mxu0 0
        %1511 = vmatpush1.bf16.msra.mxu0 0
        %1512 = vmatprep.subr.bf16.mxu0 0
        %1513 = vmatpush1.bf16.msra.mxu0 0
        %1514 = vmatprep.subr.bf16.mxu0 0
        %1515 = vmatpush1.bf16.msra.mxu0 0
        %1516 = vmatprep.subr.bf16.mxu0 0
        %1517 = vmatpush1.bf16.msra.mxu0 0
        %1518 = vmatprep.subr.bf16.mxu0 0
        %1519 = vmatpush1.bf16.msra.mxu0 0
        %1520 = vmatprep.subr.bf16.mxu0 0
        %1521 = vmatpush1.bf16.msra.mxu0 0
        %1522 = vmatprep.subr.bf16.mxu0 0
        %1523 = vmatpush1.bf16.msra.mxu0 0
        %1524 = vmatprep.subr.bf16.mxu0 0
        %1525 = vmatpush1.bf16.msra.mxu0 0
        %1526 = vmatprep.subr.bf16.mxu0 0
        %1527 = vmatpush1.bf16.msra.mxu0 0
        %1528 = vmatprep.subr.bf16.mxu0 0
        %1529 = vmatpush1.bf16.msra.mxu0 0
        %1530 = vmatprep.subr.bf16.mxu0 0
        %1531 = vmatpush1.bf16.msra.mxu0 0
        %1532 = vmatprep.subr.bf16.mxu0 0
        %1533 = vmatpush1.bf16.msra.mxu0 0
        %1534 = vmatprep.mubr.bf16.mxu0 0
        %1535 = vmatmul.mubr.bf16.gmra.mrb[0].mxu0 %v1476
        %v1536 = vpop.f32.mrb[0].mxu0
        %v1537 = vadd.f32 0.0, %v1536
        %v1538 = vpop.f32.mrb[0].mxu0
        %v1539 = vpop.f32.mrb[0].mxu0
        %v1540 = vadd.f32 0.0, %v1539
        %v1541 = vpop.f32.mrb[0].mxu0
        %1542 = vmatprep.mubr.bf16.mxu0 0
        %1543 = vmatmul.mubr.bf16.gmra.mrb[0].mxu0 %v1479
        %v1544 = vpop.f32.mrb[0].mxu0
        %v1545 = vadd.f32 0.0, %v1544
        %v1546 = vpop.f32.mrb[0].mxu0
        %v1547 = vpop.f32.mrb[0].mxu0
        %v1548 = vadd.f32 0.0, %v1547
        %v1549 = vpop.f32.mrb[0].mxu0
        %1550 = vmatprep.mubr.bf16.mxu0 0
        %1551 = vmatmul.mubr.bf16.gmra.mrb[0].mxu0 %v1482
        %v1552 = vpop.f32.mrb[0].mxu0
        %v1553 = vadd.f32 0.0, %v1552
        %v1554 = vpop.f32.mrb[0].mxu0
        %v1555 = vpop.f32.mrb[0].mxu0
        %v1556 = vadd.f32 0.0, %v1555
        %v1557 = vpop.f32.mrb[0].mxu0
        %1558 = vmatprep.mubr.bf16.mxu0 0
        %1559 = vmatmul.mubr.bf16.gmra.mrb[0].mxu0 %v1485
        %v1560 = vpop.f32.mrb[0].mxu0
        %v1561 = vadd.f32 0.0, %v1560
        %v1562 = vpop.f32.mrb[0].mxu0
        %v1563 = vpop.f32.mrb[0].mxu0
        %v1564 = vadd.f32 0.0, %v1563
        %v1565 = vpop.f32.mrb[0].mxu0
        %1566 = vmatprep.mubr.bf16.mxu0 0
        %1567 = vmatmul.mubr.bf16.gmra.mrb[0].mxu0 %v1488
        %v1568 = vpop.f32.mrb[0].mxu0
        %v1569 = vadd.f32 0.0, %v1568
        %v1570 = vpop.f32.mrb[0].mxu0
        %v1571 = vpop.f32.mrb[0].mxu0
        %v1572 = vadd.f32 0.0, %v1571
        %v1573 = vpop.f32.mrb[0].mxu0
        %1574 = vmatprep.mubr.bf16.mxu0 0
        %1575 = vmatmul.mubr.bf16.gmra.mrb[0].mxu0 %v1491
        %v1576 = vpop.f32.mrb[0].mxu0
        %v1577 = vadd.f32 0.0, %v1576
        %v1578 = vpop.f32.mrb[0].mxu0
        %v1579 = vpop.f32.mrb[0].mxu0
        %v1580 = vadd.f32 0.0, %v1579
        %v1581 = vpop.f32.mrb[0].mxu0
        %1582 = vmatprep.mubr.bf16.mxu0 0
        %1583 = vmatmul.mubr.bf16.gmra.mrb[0].mxu0 %v1494
        %v1584 = vpop.f32.mrb[0].mxu0
        %v1585 = vadd.f32 0.0, %v1584
        %v1586 = vpop.f32.mrb[0].mxu0
        %v1587 = vpop.f32.mrb[0].mxu0
        %v1588 = vadd.f32 0.0, %v1587
        %v1589 = vpop.f32.mrb[0].mxu0
        %1590 = vmatprep.mubr.bf16.mxu0 0
        %1591 = vmatmul.mubr.bf16.gmra.mrb[0].mxu0 %v1497
        %v1592 = vpop.f32.mrb[0].mxu0
        %v1593 = vadd.f32 0.0, %v1592
        %v1594 = vpop.f32.mrb[0].mxu0
        %v1595 = vpop.f32.mrb[0].mxu0
        %v1596 = vadd.f32 0.0, %v1595
        %v1597 = vpop.f32.mrb[0].mxu0
        %1598 = vdwg.mxu0
        %v1599 = vadd.f32 %v1422, %v1537
        %v1600 = vadd.f32 %v1423, %v1540
        %v1601 = vadd.f32 %v1424, %v1545
        %v1602 = vadd.f32 %v1425, %v1548
        %v1603 = vadd.f32 %v1426, %v1553
        %v1604 = vadd.f32 %v1427, %v1556
        %v1605 = vadd.f32 %v1428, %v1561
        %v1606 = vadd.f32 %v1429, %v1564
        %v1607 = vadd.f32 %v1430, %v1569
        %v1608 = vadd.f32 %v1431, %v1572
        %v1609 = vadd.f32 %v1432, %v1577
        %v1610 = vadd.f32 %v1433, %v1580
        %v1611 = vadd.f32 %v1434, %v1585
        %v1612 = vadd.f32 %v1435, %v1588
        %v1613 = vadd.f32 %v1436, %v1593
        %v1614 = vadd.f32 %v1437, %v1596
        %v1639 = vrot.slane %v1441, 1
        %v1640 = vrot.slane %v1442, 1
        %v1641 = vsel %vm301, %v1639, %v1640
        %v1642 = vrot.slane %v1443, 1
        %v1643 = vsel %vm301, %v1640, %v1642
        %v1644 = vrot.slane %v1444, 1
        %v1645 = vrot.slane %v1445, 1
        %v1646 = vsel %vm301, %v1644, %v1645
        %v1647 = vrot.slane %v1446, 1
        %v1648 = vsel %vm301, %v1645, %v1647
        %v1649 = vrot.slane %v1447, 1
        %v1650 = vrot.slane %v1448, 1
        %v1651 = vsel %vm301, %v1649, %v1650
        %v1652 = vrot.slane %v1449, 1
        %v1653 = vsel %vm301, %v1650, %v1652
        %v1654 = vrot.slane %v1450, 1
        %v1655 = vrot.slane %v1451, 1
        %v1656 = vsel %vm301, %v1654, %v1655
        %v1657 = vrot.slane %v1452, 1
        %v1658 = vsel %vm301, %v1655, %v1657
        %v1659 = vrot.slane %v1453, 1
        %v1660 = vrot.slane %v1454, 1
        %v1661 = vsel %vm301, %v1659, %v1660
        %v1662 = vrot.slane %v1455, 1
        %v1663 = vsel %vm301, %v1660, %v1662
        %v1664 = vrot.slane %v1456, 1
        %v1665 = vrot.slane %v1457, 1
        %v1666 = vsel %vm301, %v1664, %v1665
        %v1667 = vrot.slane %v1458, 1
        %v1668 = vsel %vm301, %v1665, %v1667
        %v1669 = vrot.slane %v1459, 1
        %v1670 = vrot.slane %v1460, 1
        %v1671 = vsel %vm301, %v1669, %v1670
        %v1672 = vrot.slane %v1461, 1
        %v1673 = vsel %vm301, %v1670, %v1672
        %v1674 = vrot.slane %v1462, 1
        %v1675 = vrot.slane %v1463, 1
        %v1676 = vsel %vm301, %v1674, %v1675
        %v1677 = vrot.slane %v1464, 1
        %v1678 = vsel %vm301, %v1675, %v1677
        %v1695 = vpack.c.bf16 %v1643, %v1641
        %v1696 = vpack.c.bf16 %v1648, %v1646
        %v1697 = vpack.c.bf16 %v1653, %v1651
        %v1698 = vpack.c.bf16 %v1658, %v1656
        %v1699 = vpack.c.bf16 %v1663, %v1661
        %v1700 = vpack.c.bf16 %v1668, %v1666
        %v1701 = vpack.c.bf16 %v1673, %v1671
        %v1702 = vpack.c.bf16 %v1678, %v1676
        %s1703 = scalar_lea.vmem %s1, 14
        %v1704 = vld [vmem:[%s1703] sm:$0x3]
        %v1706 = vsel %vm368, %v1695, 0
        %v1709 = vsel %vm368, %v1696, 0
        %v1712 = vsel %vm368, %v1697, 0
        %v1715 = vsel %vm368, %v1698, 0
        %v1718 = vsel %vm368, %v1699, 0
        %v1721 = vsel %vm368, %v1700, 0
        %v1724 = vsel %vm368, %v1701, 0
        %v1727 = vsel %vm368, %v1702, 0
        %v1730 = vsel %vm393, %v1704, 0
        %1732 = vmatprep.subr.bf16.mxu0 0
        %1733 = vmatpush1.bf16.msra.mxu0 %v1730
        %1734 = vmatprep.subr.bf16.mxu0 0
        %1735 = vmatpush1.bf16.msra.mxu0 0
        %1736 = vmatprep.subr.bf16.mxu0 0
        %1737 = vmatpush1.bf16.msra.mxu0 0
        %1738 = vmatprep.subr.bf16.mxu0 0
        %1739 = vmatpush1.bf16.msra.mxu0 0
        %1740 = vmatprep.subr.bf16.mxu0 0
        %1741 = vmatpush1.bf16.msra.mxu0 0
        %1742 = vmatprep.subr.bf16.mxu0 0
        %1743 = vmatpush1.bf16.msra.mxu0 0
        %1744 = vmatprep.subr.bf16.mxu0 0
        %1745 = vmatpush1.bf16.msra.mxu0 0
        %1746 = vmatprep.subr.bf16.mxu0 0
        %1747 = vmatpush1.bf16.msra.mxu0 0
        %1748 = vmatprep.subr.bf16.mxu0 0
        %1749 = vmatpush1.bf16.msra.mxu0 0
        %1750 = vmatprep.subr.bf16.mxu0 0
        %1751 = vmatpush1.bf16.msra.mxu0 0
        %1752 = vmatprep.subr.bf16.mxu0 0
        %1753 = vmatpush1.bf16.msra.mxu0 0
        %1754 = vmatprep.subr.bf16.mxu0 0
        %1755 = vmatpush1.bf16.msra.mxu0 0
        %1756 = vmatprep.subr.bf16.mxu0 0
        %1757 = vmatpush1.bf16.msra.mxu0 0
        %1758 = vmatprep.subr.bf16.mxu0 0
        %1759 = vmatpush1.bf16.msra.mxu0 0
        %1760 = vmatprep.subr.bf16.mxu0 0
        %1761 = vmatpush1.bf16.msra.mxu0 0
        %1762 = vmatprep.subr.bf16.mxu0 0
        %1763 = vmatpush1.bf16.msra.mxu0 0
        %1764 = vmatprep.mubr.bf16.mxu0 0
        %1765 = vmatmul.mubr.bf16.gmra.mrb[0].mxu0 %v1706
        %v1766 = vpop.f32.mrb[0].mxu0
        %v1767 = vadd.f32 0.0, %v1766
        %v1768 = vpop.f32.mrb[0].mxu0
        %v1769 = vpop.f32.mrb[0].mxu0
        %v1770 = vadd.f32 0.0, %v1769
        %v1771 = vpop.f32.mrb[0].mxu0
        %1772 = vmatprep.mubr.bf16.mxu0 0
        %1773 = vmatmul.mubr.bf16.gmra.mrb[0].mxu0 %v1709
        %v1774 = vpop.f32.mrb[0].mxu0
        %v1775 = vadd.f32 0.0, %v1774
        %v1776 = vpop.f32.mrb[0].mxu0
        %v1777 = vpop.f32.mrb[0].mxu0
        %v1778 = vadd.f32 0.0, %v1777
        %v1779 = vpop.f32.mrb[0].mxu0
        %1780 = vmatprep.mubr.bf16.mxu0 0
        %1781 = vmatmul.mubr.bf16.gmra.mrb[0].mxu0 %v1712
        %v1782 = vpop.f32.mrb[0].mxu0
        %v1783 = vadd.f32 0.0, %v1782
        %v1784 = vpop.f32.mrb[0].mxu0
        %v1785 = vpop.f32.mrb[0].mxu0
        %v1786 = vadd.f32 0.0, %v1785
        %v1787 = vpop.f32.mrb[0].mxu0
        %1788 = vmatprep.mubr.bf16.mxu0 0
        %1789 = vmatmul.mubr.bf16.gmra.mrb[0].mxu0 %v1715
        %v1790 = vpop.f32.mrb[0].mxu0
        %v1791 = vadd.f32 0.0, %v1790
        %v1792 = vpop.f32.mrb[0].mxu0
        %v1793 = vpop.f32.mrb[0].mxu0
        %v1794 = vadd.f32 0.0, %v1793
        %v1795 = vpop.f32.mrb[0].mxu0
        %1796 = vmatprep.mubr.bf16.mxu0 0
        %1797 = vmatmul.mubr.bf16.gmra.mrb[0].mxu0 %v1718
        %v1798 = vpop.f32.mrb[0].mxu0
        %v1799 = vadd.f32 0.0, %v1798
        %v1800 = vpop.f32.mrb[0].mxu0
        %v1801 = vpop.f32.mrb[0].mxu0
        %v1802 = vadd.f32 0.0, %v1801
        %v1803 = vpop.f32.mrb[0].mxu0
        %1804 = vmatprep.mubr.bf16.mxu0 0
        %1805 = vmatmul.mubr.bf16.gmra.mrb[0].mxu0 %v1721
        %v1806 = vpop.f32.mrb[0].mxu0
        %v1807 = vadd.f32 0.0, %v1806
        %v1808 = vpop.f32.mrb[0].mxu0
        %v1809 = vpop.f32.mrb[0].mxu0
        %v1810 = vadd.f32 0.0, %v1809
        %v1811 = vpop.f32.mrb[0].mxu0
        %1812 = vmatprep.mubr.bf16.mxu0 0
        %1813 = vmatmul.mubr.bf16.gmra.mrb[0].mxu0 %v1724
        %v1814 = vpop.f32.mrb[0].mxu0
        %v1815 = vadd.f32 0.0, %v1814
        %v1816 = vpop.f32.mrb[0].mxu0
        %v1817 = vpop.f32.mrb[0].mxu0
        %v1818 = vadd.f32 0.0, %v1817
        %v1819 = vpop.f32.mrb[0].mxu0
        %1820 = vmatprep.mubr.bf16.mxu0 0
        %1821 = vmatmul.mubr.bf16.gmra.mrb[0].mxu0 %v1727
        %v1822 = vpop.f32.mrb[0].mxu0
        %v1823 = vadd.f32 0.0, %v1822
        %v1824 = vpop.f32.mrb[0].mxu0
        %v1825 = vpop.f32.mrb[0].mxu0
        %v1826 = vadd.f32 0.0, %v1825
        %v1827 = vpop.f32.mrb[0].mxu0
        %1828 = vdwg.mxu0
        %v1829 = vadd.f32 %v1599, %v1767
        %v1830 = vadd.f32 %v1600, %v1770
        %v1831 = vadd.f32 %v1601, %v1775
        %v1832 = vadd.f32 %v1602, %v1778
        %v1833 = vadd.f32 %v1603, %v1783
        %v1834 = vadd.f32 %v1604, %v1786
        %v1835 = vadd.f32 %v1605, %v1791
        %v1836 = vadd.f32 %v1606, %v1794
        %v1837 = vadd.f32 %v1607, %v1799
        %v1838 = vadd.f32 %v1608, %v1802
        %v1839 = vadd.f32 %v1609, %v1807
        %v1840 = vadd.f32 %v1610, %v1810
        %v1841 = vadd.f32 %v1611, %v1815
        %v1842 = vadd.f32 %v1612, %v1818
        %v1843 = vadd.f32 %v1613, %v1823
        %v1844 = vadd.f32 %v1614, %v1826
        %v1845 = vrot.slane %v1441, 2
        %v1846 = vrot.slane %v1442, 2
        %v1847 = vsel %vm618, %v1845, %v1846
        %v1848 = vrot.slane %v1443, 2
        %v1849 = vsel %vm618, %v1846, %v1848
        %v1850 = vrot.slane %v1444, 2
        %v1851 = vrot.slane %v1445, 2
        %v1852 = vsel %vm618, %v1850, %v1851
        %v1853 = vrot.slane %v1446, 2
        %v1854 = vsel %vm618, %v1851, %v1853
        %v1855 = vrot.slane %v1447, 2
        %v1856 = vrot.slane %v1448, 2
        %v1857 = vsel %vm618, %v1855, %v1856
        %v1858 = vrot.slane %v1449, 2
        %v1859 = vsel %vm618, %v1856, %v1858
        %v1860 = vrot.slane %v1450, 2
        %v1861 = vrot.slane %v1451, 2
        %v1862 = vsel %vm618, %v1860, %v1861
        %v1863 = vrot.slane %v1452, 2
        %v1864 = vsel %vm618, %v1861, %v1863
        %v1865 = vrot.slane %v1453, 2
        %v1866 = vrot.slane %v1454, 2
        %v1867 = vsel %vm618, %v1865, %v1866
        %v1868 = vrot.slane %v1455, 2
        %v1869 = vsel %vm618, %v1866, %v1868
        %v1870 = vrot.slane %v1456, 2
        %v1871 = vrot.slane %v1457, 2
        %v1872 = vsel %vm618, %v1870, %v1871
        %v1873 = vrot.slane %v1458, 2
        %v1874 = vsel %vm618, %v1871, %v1873
        %v1875 = vrot.slane %v1459, 2
        %v1876 = vrot.slane %v1460, 2
        %v1877 = vsel %vm618, %v1875, %v1876
        %v1878 = vrot.slane %v1461, 2
        %v1879 = vsel %vm618, %v1876, %v1878
        %v1880 = vrot.slane %v1462, 2
        %v1881 = vrot.slane %v1463, 2
        %v1882 = vsel %vm618, %v1880, %v1881
        %v1883 = vrot.slane %v1464, 2
        %v1884 = vsel %vm618, %v1881, %v1883
        %v1901 = vpack.c.bf16 %v1849, %v1847
        %v1902 = vpack.c.bf16 %v1854, %v1852
        %v1903 = vpack.c.bf16 %v1859, %v1857
        %v1904 = vpack.c.bf16 %v1864, %v1862
        %v1905 = vpack.c.bf16 %v1869, %v1867
        %v1906 = vpack.c.bf16 %v1874, %v1872
        %v1907 = vpack.c.bf16 %v1879, %v1877
        %v1908 = vpack.c.bf16 %v1884, %v1882
        %s1909 = scalar_lea.vmem %s1, 16
        %v1910 = vld [vmem:[%s1909] sm:$0x3]
        %v1912 = vsel %vm368, %v1901, 0
        %v1915 = vsel %vm368, %v1902, 0
        %v1918 = vsel %vm368, %v1903, 0
        %v1921 = vsel %vm368, %v1904, 0
        %v1924 = vsel %vm368, %v1905, 0
        %v1927 = vsel %vm368, %v1906, 0
        %v1930 = vsel %vm368, %v1907, 0
        %v1933 = vsel %vm368, %v1908, 0
        %v1936 = vsel %vm393, %v1910, 0
        %1938 = vmatprep.subr.bf16.mxu0 0
        %1939 = vmatpush1.bf16.msra.mxu0 %v1936
        %1940 = vmatprep.subr.bf16.mxu0 0
        %1941 = vmatpush1.bf16.msra.mxu0 0
        %1942 = vmatprep.subr.bf16.mxu0 0
        %1943 = vmatpush1.bf16.msra.mxu0 0
        %1944 = vmatprep.subr.bf16.mxu0 0
        %1945 = vmatpush1.bf16.msra.mxu0 0
        %1946 = vmatprep.subr.bf16.mxu0 0
        %1947 = vmatpush1.bf16.msra.mxu0 0
        %1948 = vmatprep.subr.bf16.mxu0 0
        %1949 = vmatpush1.bf16.msra.mxu0 0
        %1950 = vmatprep.subr.bf16.mxu0 0
        %1951 = vmatpush1.bf16.msra.mxu0 0
        %1952 = vmatprep.subr.bf16.mxu0 0
        %1953 = vmatpush1.bf16.msra.mxu0 0
        %1954 = vmatprep.subr.bf16.mxu0 0
        %1955 = vmatpush1.bf16.msra.mxu0 0
        %1956 = vmatprep.subr.bf16.mxu0 0
        %1957 = vmatpush1.bf16.msra.mxu0 0
        %1958 = vmatprep.subr.bf16.mxu0 0
        %1959 = vmatpush1.bf16.msra.mxu0 0
        %1960 = vmatprep.subr.bf16.mxu0 0
        %1961 = vmatpush1.bf16.msra.mxu0 0
        %1962 = vmatprep.subr.bf16.mxu0 0
        %1963 = vmatpush1.bf16.msra.mxu0 0
        %1964 = vmatprep.subr.bf16.mxu0 0
        %1965 = vmatpush1.bf16.msra.mxu0 0
        %1966 = vmatprep.subr.bf16.mxu0 0
        %1967 = vmatpush1.bf16.msra.mxu0 0
        %1968 = vmatprep.subr.bf16.mxu0 0
        %1969 = vmatpush1.bf16.msra.mxu0 0
        %1970 = vmatprep.mubr.bf16.mxu0 0
        %1971 = vmatmul.mubr.bf16.gmra.mrb[0].mxu0 %v1912
        %v1972 = vpop.f32.mrb[0].mxu0
        %v1973 = vadd.f32 0.0, %v1972
        %v1974 = vpop.f32.mrb[0].mxu0
        %v1975 = vpop.f32.mrb[0].mxu0
        %v1976 = vadd.f32 0.0, %v1975
        %v1977 = vpop.f32.mrb[0].mxu0
        %1978 = vmatprep.mubr.bf16.mxu0 0
        %1979 = vmatmul.mubr.bf16.gmra.mrb[0].mxu0 %v1915
        %v1980 = vpop.f32.mrb[0].mxu0
        %v1981 = vadd.f32 0.0, %v1980
        %v1982 = vpop.f32.mrb[0].mxu0
        %v1983 = vpop.f32.mrb[0].mxu0
        %v1984 = vadd.f32 0.0, %v1983
        %v1985 = vpop.f32.mrb[0].mxu0
        %1986 = vmatprep.mubr.bf16.mxu0 0
        %1987 = vmatmul.mubr.bf16.gmra.mrb[0].mxu0 %v1918
        %v1988 = vpop.f32.mrb[0].mxu0
        %v1989 = vadd.f32 0.0, %v1988
        %v1990 = vpop.f32.mrb[0].mxu0
        %v1991 = vpop.f32.mrb[0].mxu0
        %v1992 = vadd.f32 0.0, %v1991
        %v1993 = vpop.f32.mrb[0].mxu0
        %1994 = vmatprep.mubr.bf16.mxu0 0
        %1995 = vmatmul.mubr.bf16.gmra.mrb[0].mxu0 %v1921
        %v1996 = vpop.f32.mrb[0].mxu0
        %v1997 = vadd.f32 0.0, %v1996
        %v1998 = vpop.f32.mrb[0].mxu0
        %v1999 = vpop.f32.mrb[0].mxu0
        %v2000 = vadd.f32 0.0, %v1999
        %v2001 = vpop.f32.mrb[0].mxu0
        %2002 = vmatprep.mubr.bf16.mxu0 0
        %2003 = vmatmul.mubr.bf16.gmra.mrb[0].mxu0 %v1924
        %v2004 = vpop.f32.mrb[0].mxu0
        %v2005 = vadd.f32 0.0, %v2004
        %v2006 = vpop.f32.mrb[0].mxu0
        %v2007 = vpop.f32.mrb[0].mxu0
        %v2008 = vadd.f32 0.0, %v2007
        %v2009 = vpop.f32.mrb[0].mxu0
        %2010 = vmatprep.mubr.bf16.mxu0 0
        %2011 = vmatmul.mubr.bf16.gmra.mrb[0].mxu0 %v1927
        %v2012 = vpop.f32.mrb[0].mxu0
        %v2013 = vadd.f32 0.0, %v2012
        %v2014 = vpop.f32.mrb[0].mxu0
        %v2015 = vpop.f32.mrb[0].mxu0
        %v2016 = vadd.f32 0.0, %v2015
        %v2017 = vpop.f32.mrb[0].mxu0
        %2018 = vmatprep.mubr.bf16.mxu0 0
        %2019 = vmatmul.mubr.bf16.gmra.mrb[0].mxu0 %v1930
        %v2020 = vpop.f32.mrb[0].mxu0
        %v2021 = vadd.f32 0.0, %v2020
        %v2022 = vpop.f32.mrb[0].mxu0
        %v2023 = vpop.f32.mrb[0].mxu0
        %v2024 = vadd.f32 0.0, %v2023
        %v2025 = vpop.f32.mrb[0].mxu0
        %2026 = vmatprep.mubr.bf16.mxu0 0
        %2027 = vmatmul.mubr.bf16.gmra.mrb[0].mxu0 %v1933
        %v2028 = vpop.f32.mrb[0].mxu0
        %v2029 = vadd.f32 0.0, %v2028
        %v2030 = vpop.f32.mrb[0].mxu0
        %v2031 = vpop.f32.mrb[0].mxu0
        %v2032 = vadd.f32 0.0, %v2031
        %v2033 = vpop.f32.mrb[0].mxu0
        %2034 = vdwg.mxu0
        %v2035 = vadd.f32 %v1829, %v1973
        %v2036 = vadd.f32 %v1830, %v1976
        %v2037 = vadd.f32 %v1831, %v1981
        %v2038 = vadd.f32 %v1832, %v1984
        %v2039 = vadd.f32 %v1833, %v1989
        %v2040 = vadd.f32 %v1834, %v1992
        %v2041 = vadd.f32 %v1835, %v1997
        %v2042 = vadd.f32 %v1836, %v2000
        %v2043 = vadd.f32 %v1837, %v2005
        %v2044 = vadd.f32 %v1838, %v2008
        %v2045 = vadd.f32 %v1839, %v2013
        %v2046 = vadd.f32 %v1840, %v2016
        %v2047 = vadd.f32 %v1841, %v2021
        %v2048 = vadd.f32 %v1842, %v2024
        %v2049 = vadd.f32 %v1843, %v2029
        %v2050 = vadd.f32 %v1844, %v2032
        %v2051 = vld [vmem:[%s2] sm:$0x1]
        %v2053 = vlaneseq
        %v2054 = vshrl.u32 %v2053, 7
        %v2055 = vsub.s32 0, %v2054
        %v2056 = vrot.slane %v2051, %v2055
        %v2058 = vadd.f32 %v2035, %v2056
        %v2059 = vadd.f32 %v2036, %v2056
        %v2060 = vadd.f32 %v2037, %v2056
        %v2061 = vadd.f32 %v2038, %v2056
        %v2062 = vadd.f32 %v2039, %v2056
        %v2063 = vadd.f32 %v2040, %v2056
        %v2064 = vadd.f32 %v2041, %v2056
        %v2065 = vadd.f32 %v2042, %v2056
        %v2066 = vadd.f32 %v2043, %v2056
        %v2067 = vadd.f32 %v2044, %v2056
        %v2068 = vadd.f32 %v2045, %v2056
        %v2069 = vadd.f32 %v2046, %v2056
        %v2070 = vadd.f32 %v2047, %v2056
        %v2071 = vadd.f32 %v2048, %v2056
        %v2072 = vadd.f32 %v2049, %v2056
        %v2073 = vadd.f32 %v2050, %v2056
        %v2074 = vmax.f32 %v2058, 0.0
        %v2075 = vmax.f32 %v2059, 0.0
        %v2076 = vmax.f32 %v2060, 0.0
        %v2077 = vmax.f32 %v2061, 0.0
        %v2078 = vmax.f32 %v2062, 0.0
        %v2079 = vmax.f32 %v2063, 0.0
        %v2080 = vmax.f32 %v2064, 0.0
        %v2081 = vmax.f32 %v2065, 0.0
        %v2082 = vmax.f32 %v2066, 0.0
        %v2083 = vmax.f32 %v2067, 0.0
        %v2084 = vmax.f32 %v2068, 0.0
        %v2085 = vmax.f32 %v2069, 0.0
        %v2086 = vmax.f32 %v2070, 0.0
        %v2087 = vmax.f32 %v2071, 0.0
        %v2088 = vmax.f32 %v2072, 0.0
        %v2089 = vmax.f32 %v2073, 0.0
        %v2090 = vld [vmem:[#allocation2] sm:$0x1]
        %vm2091 = vcmask 261120
        %v2092 = vsel %vm2091, %v2074, 0.0
        %v2093 = vsel %vm2091, %v2075, 0.0
        %v2094 = vadd.f32 %v2092, %v2093
        %v2095 = vsel %vm2091, %v2076, 0.0
        %v2096 = vadd.f32 %v2094, %v2095
        %v2097 = vsel %vm2091, %v2077, 0.0
        %v2098 = vadd.f32 %v2096, %v2097
        %v2099 = vsel %vm2091, %v2078, 0.0
        %v2100 = vadd.f32 %v2098, %v2099
        %v2101 = vsel %vm2091, %v2079, 0.0
        %v2102 = vadd.f32 %v2100, %v2101
        %v2103 = vsel %vm2091, %v2080, 0.0
        %v2104 = vadd.f32 %v2102, %v2103
        %v2105 = vsel %vm2091, %v2081, 0.0
        %v2106 = vadd.f32 %v2104, %v2105
        %v2107 = vsel %vm2091, %v2082, 0.0
        %v2108 = vadd.f32 %v2106, %v2107
        %v2109 = vsel %vm2091, %v2083, 0.0
        %v2110 = vadd.f32 %v2108, %v2109
        %v2111 = vsel %vm2091, %v2084, 0.0
        %v2112 = vadd.f32 %v2110, %v2111
        %v2113 = vsel %vm2091, %v2085, 0.0
        %v2114 = vadd.f32 %v2112, %v2113
        %v2115 = vsel %vm2091, %v2086, 0.0
        %v2116 = vadd.f32 %v2114, %v2115
        %v2117 = vsel %vm2091, %v2087, 0.0
        %v2118 = vadd.f32 %v2116, %v2117
        %v2119 = vsel %vm2091, %v2088, 0.0
        %v2120 = vadd.f32 %v2118, %v2119
        %v2121 = vsel %vm2091, %v2089, 0.0
        %v2122 = vadd.f32 %v2120, %v2121
        %v2123 = vrot.slane %v2122, 4
        %v2124 = vadd.f32 %v2122, %v2123
        %v2125 = vrot.slane %v2124, 2
        %v2126 = vadd.f32 %v2124, %v2125
        %v2127 = vrot.slane %v2126, 1
        %v2128 = vadd.f32 %v2126, %v2127
        %v2129 = vadd.f32 %v2090, %v2128
        %vm2130 = vcmask 253952
        %2131 = vst.msk [vmem:[#allocation2] sm:$0x1] %vm2130, %v2129
        %p2132 = scmp.eq.s32.totalorder %s24, 1
        // Predicated region
        $region45: #{tpu_custom_call.1} parent=39 // pred_check
          %p2133 = pneg %p2132
        $region46: #{tpu_custom_call.1} parent=39 // pred_check_branch
          %2135 = sbr.rel (%p2133) target = $region48
        $region47: #{tpu_custom_call.1} parent=39 // pred_region
          %v2136 = vld [vmem:[#allocation2] sm:$0x1]
          %v2137 = vmul.f32 %v2136, 0.00390625
          %v2138 = vpack.c.bf16 %v2137, %v2137
          %v2139 = vld [vmem:[%s3] sm:$0xf]
          %v2140 = vld [vmem:[%s3 + $0x4] sm:$0xf]
          %v2141 = vld [vmem:[%s3 + $0x8] sm:$0xf]
          %v2142 = vld [vmem:[%s3 + $0xc] sm:$0xf]
          %v2143 = vld [vmem:[%s4] sm:$0x1]
          %v2148 = vunpack.c.l.b16 %v2139
          %v2149 = vunpack.c.l.b16 %v2140
          %v2150 = vunpack.c.l.b16 %v2141
          %v2151 = vunpack.c.l.b16 %v2142
          %v2152 = vpack.c.b16 %v2149, %v2148
          %v2153 = vpack.c.b16 %v2151, %v2150
          %v2157 = vsel %vm2091, %v2138, 0
          %2159 = vmatprep.subr.bf16.mxu0 0
          %2160 = vmatpush1.bf16.msra.mxu0 %v2152
          %2161 = vmatprep.subr.bf16.mxu0 0
          %2162 = vmatpush1.bf16.msra.mxu0 %v2153
          %2163 = vmatprep.subr.bf16.mxu0 0
          %2164 = vmatpush1.bf16.msra.mxu0 0
          %2165 = vmatprep.subr.bf16.mxu0 0
          %2166 = vmatpush1.bf16.msra.mxu0 0
          %2167 = vmatprep.subr.bf16.mxu0 0
          %2168 = vmatpush1.bf16.msra.mxu0 0
          %2169 = vmatprep.subr.bf16.mxu0 0
          %2170 = vmatpush1.bf16.msra.mxu0 0
          %2171 = vmatprep.subr.bf16.mxu0 0
          %2172 = vmatpush1.bf16.msra.mxu0 0
          %2173 = vmatprep.subr.bf16.mxu0 0
          %2174 = vmatpush1.bf16.msra.mxu0 0
          %2175 = vmatprep.subr.bf16.mxu0 0
          %2176 = vmatpush1.bf16.msra.mxu0 0
          %2177 = vmatprep.subr.bf16.mxu0 0
          %2178 = vmatpush1.bf16.msra.mxu0 0
          %2179 = vmatprep.subr.bf16.mxu0 0
          %2180 = vmatpush1.bf16.msra.mxu0 0
          %2181 = vmatprep.subr.bf16.mxu0 0
          %2182 = vmatpush1.bf16.msra.mxu0 0
          %2183 = vmatprep.subr.bf16.mxu0 0
          %2184 = vmatpush1.bf16.msra.mxu0 0
          %2185 = vmatprep.subr.bf16.mxu0 0
          %2186 = vmatpush1.bf16.msra.mxu0 0
          %2187 = vmatprep.subr.bf16.mxu0 0
          %2188 = vmatpush1.bf16.msra.mxu0 0
          %2189 = vmatprep.subr.bf16.mxu0 0
          %2190 = vmatpush1.bf16.msra.mxu0 0
          %2191 = vmatprep.mubr.bf16.mxu0 0
          %2192 = vmatmul.mubr.bf16.gmra.mrb[0].mxu0 %v2157
          %v2193 = vpop.f32.mrb[0].mxu0
          %v2194 = vadd.f32 %v2143, %v2193
          %v2195 = vpop.f32.mrb[0].mxu0
          %v2196 = vpop.f32.mrb[0].mxu0
          %v2197 = vpop.f32.mrb[0].mxu0
          %2198 = vdwg.mxu0
          %v2199 = vmul.f32 %v2194, %v2194
          %v2200 = vsel %vm2130, %v2199, 0.0
          %2201 = vadd.xlane.f32.xlu0 %v2200
          %v2202 = vpop.xlane.xlu0 %2201
          %v2203 = vmax.f32 %v2202, 1e-24
          %v2204 = vrsqrt.pop %v2203
          %v2205 = vmul.f32 %v2194, %v2204
          %2206 = vst.msk [vmem:[%s228] sm:$0x1] %vm2130, %v2205
        $region48: #{tpu_custom_call.1} parent=39 // pred_fallthru
          _
        %s2207 = sand.u32 %s149, 1
        %s2208 = scalar_lea.sflag [#allocation4], %s2207
        %s2209 = sand.u32 %s149, 1
        %s2210 = scalar_lea.vmem [#allocation3], %s2209
        // Predicated region
        $region49: #{tpu_custom_call.1} parent=39 // pred_check
          %p2211 = pneg %p159
        $region50: #{tpu_custom_call.1} parent=39 // pred_check_branch
          %2213 = sbr.rel (%p2211) target = $region52
        $region51: #{tpu_custom_call.1} parent=39 // pred_region
          %s2215 = ssub.s32 16, 16
          %2216 = vsyncadd %s2208, %s2215
          %s2217 = smul.addr %s23, 16
          %s2218 = scalar_lea.hbm %s5, %s2217
          %s2220 = sshll.u32 %s2210, 4
          %s2221 = int_to_ptr.vmem [resolvable:$true] %s2220
          %2223 = dma.vmem_to_hbm [thread:$0]  %s2221, 16, %s2218, %s2208
        $region52: #{tpu_custom_call.1} parent=39 // pred_fallthru
          _
      $region40: #{tpu_custom_call.1} parent=5 // pred_fallthru
        _
      %p2224 = scmp.le.s32.totalorder 2, %s14
      // Predicated region
      $region53: #{tpu_custom_call.1} parent=5 // pred_check
        %p2225 = pneg %p2224
      $region54: #{tpu_custom_call.1} parent=5 // pred_check_branch
        %2227 = sbr.rel (%p2225) target = $region56
      $region55: #{tpu_custom_call.1} parent=5 // pred_region
        %s2228 = ssub.s32 %s14, 2
        // Predicated region
        $region57: #{tpu_custom_call.1} parent=55 // pred_check
          %p2229 = pneg %p165
        $region58: #{tpu_custom_call.1} parent=55 // pred_check_branch
          %2231 = sbr.rel (%p2229) target = $region60
        $region59: #{tpu_custom_call.1} parent=55 // pred_region
          %s2232 = sand.u32 %s150, 1
          %s2233 = scalar_lea.sflag [#allocation4], %s2232
          %s2234 = sand.u32 %s150, 1
          %s2235 = scalar_lea.vmem [#allocation3], %s2234
          %2236 = dma.done %s2233, 16
        $region60: #{tpu_custom_call.1} parent=55 // pred_fallthru
          _
      $region56: #{tpu_custom_call.1} parent=5 // pred_fallthru
        _
    $region6: #{tpu_custom_call.1} parent=1 // loop_footer
      %s18 = sadd.s32 1, %s14
    $region7: #{tpu_custom_call.1} parent=1 // loop_footer_branch
      %13 = sbr.rel target = $region3
    $region8: #{tpu_custom_call.1} parent=1 // loop_exit
      _
    %2237 = vsyncpa [#allocation4], 1
    %s2238 = scalar_lea.sflag [#allocation4], 1
    %2239 = vsyncpa %s2238, 1

</llo_original>
